<compile_context>
chip_gen: v5e
topology: v5e:2x2
jax: 0.10.0
libtpu: 0.0.40
codegen_flags: <defaults>
</compile_context>

<pallas_src>
import functools

import jax
import jax.numpy as jnp
from jax.experimental import pallas as pl
from jax.experimental.pallas import tpu as pltpu


def _round_up(x, m):
    return ((x + m - 1) // m) * m


# ----------------------------- Pallas kernel --------------------------------
def _conv3x3_bn_relu_kernel(x_ref, w_ref, scale_ref, shift_ref, o_ref, *, wp):
    """Direct 3x3 (stride-1, pad-1) conv as 9 shifted matmuls + fused BN/ReLU.

    x_ref:     (1, rows_pad, cin_p) integer-valued bf16, flattened padded image
               (row r = h_pad*wp + w_pad), extra zero rows at the bottom.
    w_ref:     (9, cin_p, tn)       bf16 +/-1 binarized weights, tap t = dh*3+dw.
    scale_ref: (1, tn)              f32 folded scale  = gamma/sqrt(var+eps)*sa*sw
    shift_ref: (1, tn)              f32 folded shift  = beta - mean*gamma/sqrt(var+eps)
    o_ref:     (1, m_rows, tn)      bf16 output, m_rows = H*wp (valid cols are < W).
    """
    m = o_ref.shape[1]
    tn = o_ref.shape[2]
    acc = jnp.zeros((m, tn), jnp.float32)
    for t in range(9):                       # static unrolled 9-tap accumulation
        off = (t // 3) * wp + (t % 3)        # dh*Wp + dw  (contiguous row shift)
        acc = acc + jnp.dot(x_ref[0, pl.ds(off, m), :], w_ref[t],
                            preferred_element_type=jnp.float32)
    y = acc * scale_ref[...] + shift_ref[...]
    o_ref[0] = jnp.maximum(y, 0.0).astype(o_ref.dtype)


# ------------------------------- glue (JAX) ---------------------------------
@functools.partial(jax.jit, static_argnames=("stride",))
def basic_block_1w4a_forward(x_nchw, conv_w, step_a, step_w,
                             bn_gamma, bn_beta, bn_mean, bn_var,
                             stride=1, eps=1e-5):
    """Forward pass of BasicBlock1_1w4a_F.  x_nchw: (N, Cin, H, W) float32."""
    n, cin, h, w = x_nchw.shape
    planes = conv_w.shape[0]
    assert conv_w.shape[1:] == (cin, 3, 3)

    sa = jnp.asarray(step_a, jnp.float32)
    sw = jnp.asarray(step_w, jnp.float32)

    # --- 4-bit signed LSQ activation quantization, once, on the raw input.
    # Integer result (|q| <= 8) is exactly representable in bf16.
    # TODO(synk): keep the surrounding model NHWC to drop this transpose pass.
    x_nhwc = jnp.transpose(x_nchw, (0, 2, 3, 1))
    xq = jnp.clip(jnp.round(x_nhwc / sa), -8.0, 7.0).astype(jnp.bfloat16)

    # Channel pad to a sublane-friendly multiple of 8 (zeros contribute nothing
    # to the dot).  We deliberately do NOT pad Cin to 128: that would inflate
    # activation HBM bytes, which is the traffic we are trying to minimize.
    cin_p = max(8, _round_up(cin, 8))
    xq = jnp.pad(xq, ((0, 0), (1, 1), (1, 1), (0, cin_p - cin)))   # spatial pad=1
    hp, wp = h + 2, w + 2

    # Flatten the padded image per batch element; add >=2 trailing zero rows so the
    # (dh=2, dw=2) shifted slice stays in bounds, rounded to 8 sublanes.
    m_rows = h * wp                          # stride-1 "wide" output rows
    rows_pad = _round_up(hp * wp + 2, 8)
    x2d = xq.reshape(n, hp * wp, cin_p)
    x2d = jnp.pad(x2d, ((0, 0), (0, rows_pad - hp * wp), (0, 0)))

    # --- 1-bit weight quantization once in the wrapper: sign(w) as bf16 +/-1.
    # (O, I, 3, 3) -> (3, 3, I, O) -> (9, I, O), tap index = dh*3+dw.
    w_sign = jnp.where(conv_w >= 0.0, 1.0, -1.0).astype(jnp.bfloat16)
    w_mat = jnp.transpose(w_sign, (2, 3, 1, 0)).reshape(9, cin, planes)
    c_pad = _round_up(planes, 128)                       # lane-dense output channels
    w_mat = jnp.pad(w_mat, ((0, 0), (0, cin_p - cin), (0, c_pad - planes)))

    # --- fold eval-mode BatchNorm + quant scales into per-channel scale/shift.
    inv_std = 1.0 / jnp.sqrt(bn_var + eps)
    bn_scale = bn_gamma * inv_std
    scale = jnp.pad((bn_scale * sa * sw).astype(jnp.float32),
                    (0, c_pad - planes)).reshape(1, c_pad)
    shift = jnp.pad((bn_beta - bn_mean * bn_scale).astype(jnp.float32),
                    (0, c_pad - planes)).reshape(1, c_pad)

    # --- pick the Cout tile from the real double-buffered footprint so it fits
    # comfortably under v7x's 64 MiB VMEM; prefer fully resident weights.
    def footprint(tn):
        xb = rows_pad * cin_p * 2            # activation block (bf16)
        wb = 9 * cin_p * tn * 2              # weight block (bf16)
        ob = m_rows * tn * 2                 # output block (bf16)
        acc = m_rows * tn * 4                # in-kernel f32 accumulator
        return 2 * (xb + wb + ob) + acc

    tn = 128
    for cand in (c_pad, 512, 256, 128):
        if cand <= c_pad and c_pad % cand == 0 and footprint(cand) <= (40 << 20):
            tn = cand
            break
    vmem_limit = int(min(max(footprint(tn) + (4 << 20), 16 << 20), 60 << 20))

    # Grid: cout tiles outer, batch inner -> the weight block index is constant
    # across the inner axis, so the weight panel is not re-streamed per image.
    grid = (c_pad // tn, n)

    out2d = pl.pallas_call(
        functools.partial(_conv3x3_bn_relu_kernel, wp=wp),
        out_shape=jax.ShapeDtypeStruct((n, m_rows, c_pad), jnp.bfloat16),
        grid=grid,
        in_specs=[
            pl.BlockSpec((1, rows_pad, cin_p), lambda j, b: (b, 0, 0)),  # image
            pl.BlockSpec((9, cin_p, tn), lambda j, b: (0, 0, j)),        # weights
            pl.BlockSpec((1, tn), lambda j, b: (0, j)),                  # BN scale
            pl.BlockSpec((1, tn), lambda j, b: (0, j)),                  # BN shift
        ],
        out_specs=pl.BlockSpec((1, m_rows, tn), lambda j, b: (b, 0, j)),
        compiler_params=pltpu.CompilerParams(
            dimension_semantics=("parallel", "parallel"),
            vmem_limit_bytes=vmem_limit),
    )(x2d, w_mat, scale, shift)

    # (N, H*Wp, c_pad) -> (N, H, Wp, c_pad); crop the 2 garbage width columns and
    # the channel padding, then back to NCHW for the module interface.
    out = out2d.reshape(n, h, wp, c_pad)[:, :, :w, :planes]
    if stride > 1:
        out = out[:, ::stride, ::stride, :]
    return jnp.transpose(out, (0, 3, 1, 2)).astype(jnp.float32)


# ------------------------- pure-JAX reference check --------------------------
def _im2col_nhwc(x_nhwc, ksize=3, stride=1, pad=1):
    n, h, w, c = x_nhwc.shape
    xp = jnp.pad(x_nhwc, ((0, 0), (pad, pad), (pad, pad), (0, 0)))
    ho = (h + 2 * pad - ksize) // stride + 1
    wo = (w + 2 * pad - ksize) // stride + 1
    cols = []
    for dh in range(ksize):
        for dw in range(ksize):
            cols.append(
                xp[:, dh:dh + stride * ho:stride, dw:dw + stride * wo:stride, :])
    patches = jnp.stack(cols, axis=3)
    return patches.reshape(n * ho * wo, ksize * ksize * c), (n, ho, wo)


def _reference(x_nchw, conv_w, step_a, step_w, bn_gamma, bn_beta, bn_mean,
               bn_var, stride=1, eps=1e-5):
    planes = conv_w.shape[0]
    x_nhwc = jnp.transpose(x_nchw, (0, 2, 3, 1))
    patches, (n, ho, wo) = _im2col_nhwc(x_nhwc, 3, stride, 1)
    w_mat = jnp.transpose(conv_w, (2, 3, 1, 0)).reshape(-1, planes)
    xq = jnp.clip(jnp.round(patches / step_a), -8.0, 7.0) * step_a
    wq = jnp.where(w_mat >= 0.0, 1.0, -1.0) * step_w
    y = xq @ wq
    scale = bn_gamma / jnp.sqrt(bn_var + eps)
    y = y * scale + (bn_beta - bn_mean * scale)
    y = jnp.maximum(y, 0.0)
    return jnp.transpose(y.reshape(n, ho, wo, planes), (0, 3, 1, 2))


if __name__ == "__main__":
    key = jax.random.PRNGKey(0)
    k_x, k_w, k_g, k_b, k_m, k_v = jax.random.split(key, 6)

    N, Cin, H, W = 2, 4, 16, 16
    planes, stride = 8, 1

    x = jax.random.normal(k_x, (N, Cin, H, W), dtype=jnp.float32)
    conv_w = jax.random.normal(k_w, (planes, Cin, 3, 3), dtype=jnp.float32) * 0.1

    step_a = jnp.float32(0.1)                      # LSQ activation step size
    step_w = jnp.mean(jnp.abs(conv_w))             # binary weight scale
    bn_gamma = 1.0 + 0.1 * jax.random.normal(k_g, (planes,), dtype=jnp.float32)
    bn_beta = 0.1 * jax.random.normal(k_b, (planes,), dtype=jnp.float32)
    bn_mean = 0.05 * jax.random.normal(k_m, (planes,), dtype=jnp.float32)
    bn_var = 1.0 + 0.1 * jnp.abs(jax.random.normal(k_v, (planes,), dtype=jnp.float32))

    out = basic_block_1w4a_forward(
        x, conv_w, step_a, step_w, bn_gamma, bn_beta, bn_mean, bn_var,
        stride=stride)
    out = jax.block_until_ready(out)

    ref = _reference(x, conv_w, step_a, step_w, bn_gamma, bn_beta, bn_mean,
                     bn_var, stride=stride)
    assert out.shape == (N, planes, H, W)
    # Matmul accumulation is exact (integer x +/-1); only the final bf16 store rounds.
    assert jnp.allclose(out, ref, atol=2e-2, rtol=2e-2), "mismatch vs reference"

    print("KERNEL_OK")
</pallas_src>

<mosaic_0001>
module attributes {stable_mosaic.version = 11 : i64} {
  func.func @_conv3x3_bn_relu_kernel(%arg0: i32, %arg1: i32, %arg2: memref<1x328x8xbf16, #tpu.memory_space<vmem>>, %arg3: memref<9x8x128xbf16, #tpu.memory_space<vmem>>, %arg4: memref<1x128xf32, #tpu.memory_space<vmem>>, %arg5: memref<1x128xf32, #tpu.memory_space<vmem>>, %arg6: memref<1x288x128xbf16, #tpu.memory_space<vmem>>) attributes {dimension_semantics = [#tpu.dimension_semantics<parallel>, #tpu.dimension_semantics<parallel>], iteration_bounds = array<i64: 1, 2>, scalar_prefetch = 0 : i64, scratch_operands = 0 : i64, tpu.core_type = #tpu.core_type<tc>, window_params = [{transform_indices = @transform_0, window_bounds = array<i64: 1, 328, 8>}, {transform_indices = @transform_1, window_bounds = array<i64: 9, 8, 128>}, {transform_indices = @transform_2, window_bounds = array<i64: 1, 128>}, {transform_indices = @transform_3, window_bounds = array<i64: 1, 128>}, {transform_indices = @transform_4, window_bounds = array<i64: 1, 288, 128>}]} {
    %cst = arith.constant 0.000000e+00 : f32
    %0 = vector.broadcast %cst : f32 to vector<288x128xf32>
    %c0 = arith.constant 0 : index
    %c0_0 = arith.constant 0 : index
    %c0_1 = arith.constant 0 : index
    %1 = vector.load %arg2[%c0, %c0_0, %c0_1] : memref<1x328x8xbf16, #tpu.memory_space<vmem>>, vector<1x288x8xbf16>
    %2 = vector.shape_cast %1 : vector<1x288x8xbf16> to vector<288x8xbf16>
    %c0_2 = arith.constant 0 : index
    %c0_3 = arith.constant 0 : index
    %c0_4 = arith.constant 0 : index
    %3 = vector.load %arg3[%c0_2, %c0_3, %c0_4] : memref<9x8x128xbf16, #tpu.memory_space<vmem>>, vector<1x8x128xbf16>
    %4 = vector.shape_cast %3 : vector<1x8x128xbf16> to vector<8x128xbf16>
    %cst_5 = arith.constant dense<0.000000e+00> : vector<288x128xf32>
    %5 = tpu.matmul %2, %4, %cst_5 {dimension_numbers = #tpu.dot_dimension_numbers<[1], [0], [0], [1], [0, 0, 1, 1], [], []>} : vector<288x8xbf16>, vector<8x128xbf16>, vector<288x128xf32> -> vector<288x128xf32>
    %6 = arith.addf %0, %5 : vector<288x128xf32>
    %c0_6 = arith.constant 0 : index
    %c1 = arith.constant 1 : index
    %c0_7 = arith.constant 0 : index
    %7 = vector.load %arg2[%c0_6, %c1, %c0_7] : memref<1x328x8xbf16, #tpu.memory_space<vmem>>, vector<1x288x8xbf16>
    %8 = vector.shape_cast %7 : vector<1x288x8xbf16> to vector<288x8xbf16>
    %c1_8 = arith.constant 1 : index
    %c0_9 = arith.constant 0 : index
    %c0_10 = arith.constant 0 : index
    %9 = vector.load %arg3[%c1_8, %c0_9, %c0_10] : memref<9x8x128xbf16, #tpu.memory_space<vmem>>, vector<1x8x128xbf16>
    %10 = vector.shape_cast %9 : vector<1x8x128xbf16> to vector<8x128xbf16>
    %cst_11 = arith.constant dense<0.000000e+00> : vector<288x128xf32>
    %11 = tpu.matmul %8, %10, %cst_11 {dimension_numbers = #tpu.dot_dimension_numbers<[1], [0], [0], [1], [0, 0, 1, 1], [], []>} : vector<288x8xbf16>, vector<8x128xbf16>, vector<288x128xf32> -> vector<288x128xf32>
    %12 = arith.addf %6, %11 : vector<288x128xf32>
    %c0_12 = arith.constant 0 : index
    %c2 = arith.constant 2 : index
    %c0_13 = arith.constant 0 : index
    %13 = vector.load %arg2[%c0_12, %c2, %c0_13] : memref<1x328x8xbf16, #tpu.memory_space<vmem>>, vector<1x288x8xbf16>
    %14 = vector.shape_cast %13 : vector<1x288x8xbf16> to vector<288x8xbf16>
    %c2_14 = arith.constant 2 : index
    %c0_15 = arith.constant 0 : index
    %c0_16 = arith.constant 0 : index
    %15 = vector.load %arg3[%c2_14, %c0_15, %c0_16] : memref<9x8x128xbf16, #tpu.memory_space<vmem>>, vector<1x8x128xbf16>
    %16 = vector.shape_cast %15 : vector<1x8x128xbf16> to vector<8x128xbf16>
    %cst_17 = arith.constant dense<0.000000e+00> : vector<288x128xf32>
    %17 = tpu.matmul %14, %16, %cst_17 {dimension_numbers = #tpu.dot_dimension_numbers<[1], [0], [0], [1], [0, 0, 1, 1], [], []>} : vector<288x8xbf16>, vector<8x128xbf16>, vector<288x128xf32> -> vector<288x128xf32>
    %18 = arith.addf %12, %17 : vector<288x128xf32>
    %c0_18 = arith.constant 0 : index
    %c18 = arith.constant 18 : index
    %c0_19 = arith.constant 0 : index
    %19 = vector.load %arg2[%c0_18, %c18, %c0_19] : memref<1x328x8xbf16, #tpu.memory_space<vmem>>, vector<1x288x8xbf16>
    %20 = vector.shape_cast %19 : vector<1x288x8xbf16> to vector<288x8xbf16>
    %c3 = arith.constant 3 : index
    %c0_20 = arith.constant 0 : index
    %c0_21 = arith.constant 0 : index
    %21 = vector.load %arg3[%c3, %c0_20, %c0_21] : memref<9x8x128xbf16, #tpu.memory_space<vmem>>, vector<1x8x128xbf16>
    %22 = vector.shape_cast %21 : vector<1x8x128xbf16> to vector<8x128xbf16>
    %cst_22 = arith.constant dense<0.000000e+00> : vector<288x128xf32>
    %23 = tpu.matmul %20, %22, %cst_22 {dimension_numbers = #tpu.dot_dimension_numbers<[1], [0], [0], [1], [0, 0, 1, 1], [], []>} : vector<288x8xbf16>, vector<8x128xbf16>, vector<288x128xf32> -> vector<288x128xf32>
    %24 = arith.addf %18, %23 : vector<288x128xf32>
    %c0_23 = arith.constant 0 : index
    %c19 = arith.constant 19 : index
    %c0_24 = arith.constant 0 : index
    %25 = vector.load %arg2[%c0_23, %c19, %c0_24] : memref<1x328x8xbf16, #tpu.memory_space<vmem>>, vector<1x288x8xbf16>
    %26 = vector.shape_cast %25 : vector<1x288x8xbf16> to vector<288x8xbf16>
    %c4 = arith.constant 4 : index
    %c0_25 = arith.constant 0 : index
    %c0_26 = arith.constant 0 : index
    %27 = vector.load %arg3[%c4, %c0_25, %c0_26] : memref<9x8x128xbf16, #tpu.memory_space<vmem>>, vector<1x8x128xbf16>
    %28 = vector.shape_cast %27 : vector<1x8x128xbf16> to vector<8x128xbf16>
    %cst_27 = arith.constant dense<0.000000e+00> : vector<288x128xf32>
    %29 = tpu.matmul %26, %28, %cst_27 {dimension_numbers = #tpu.dot_dimension_numbers<[1], [0], [0], [1], [0, 0, 1, 1], [], []>} : vector<288x8xbf16>, vector<8x128xbf16>, vector<288x128xf32> -> vector<288x128xf32>
    %30 = arith.addf %24, %29 : vector<288x128xf32>
    %c0_28 = arith.constant 0 : index
    %c20 = arith.constant 20 : index
    %c0_29 = arith.constant 0 : index
    %31 = vector.load %arg2[%c0_28, %c20, %c0_29] : memref<1x328x8xbf16, #tpu.memory_space<vmem>>, vector<1x288x8xbf16>
    %32 = vector.shape_cast %31 : vector<1x288x8xbf16> to vector<288x8xbf16>
    %c5 = arith.constant 5 : index
    %c0_30 = arith.constant 0 : index
    %c0_31 = arith.constant 0 : index
    %33 = vector.load %arg3[%c5, %c0_30, %c0_31] : memref<9x8x128xbf16, #tpu.memory_space<vmem>>, vector<1x8x128xbf16>
    %34 = vector.shape_cast %33 : vector<1x8x128xbf16> to vector<8x128xbf16>
    %cst_32 = arith.constant dense<0.000000e+00> : vector<288x128xf32>
    %35 = tpu.matmul %32, %34, %cst_32 {dimension_numbers = #tpu.dot_dimension_numbers<[1], [0], [0], [1], [0, 0, 1, 1], [], []>} : vector<288x8xbf16>, vector<8x128xbf16>, vector<288x128xf32> -> vector<288x128xf32>
    %36 = arith.addf %30, %35 : vector<288x128xf32>
    %c0_33 = arith.constant 0 : index
    %c36 = arith.constant 36 : index
    %c0_34 = arith.constant 0 : index
    %37 = vector.load %arg2[%c0_33, %c36, %c0_34] : memref<1x328x8xbf16, #tpu.memory_space<vmem>>, vector<1x288x8xbf16>
    %38 = vector.shape_cast %37 : vector<1x288x8xbf16> to vector<288x8xbf16>
    %c6 = arith.constant 6 : index
    %c0_35 = arith.constant 0 : index
    %c0_36 = arith.constant 0 : index
    %39 = vector.load %arg3[%c6, %c0_35, %c0_36] : memref<9x8x128xbf16, #tpu.memory_space<vmem>>, vector<1x8x128xbf16>
    %40 = vector.shape_cast %39 : vector<1x8x128xbf16> to vector<8x128xbf16>
    %cst_37 = arith.constant dense<0.000000e+00> : vector<288x128xf32>
    %41 = tpu.matmul %38, %40, %cst_37 {dimension_numbers = #tpu.dot_dimension_numbers<[1], [0], [0], [1], [0, 0, 1, 1], [], []>} : vector<288x8xbf16>, vector<8x128xbf16>, vector<288x128xf32> -> vector<288x128xf32>
    %42 = arith.addf %36, %41 : vector<288x128xf32>
    %c0_38 = arith.constant 0 : index
    %c37 = arith.constant 37 : index
    %c0_39 = arith.constant 0 : index
    %43 = vector.load %arg2[%c0_38, %c37, %c0_39] : memref<1x328x8xbf16, #tpu.memory_space<vmem>>, vector<1x288x8xbf16>
    %44 = vector.shape_cast %43 : vector<1x288x8xbf16> to vector<288x8xbf16>
    %c7 = arith.constant 7 : index
    %c0_40 = arith.constant 0 : index
    %c0_41 = arith.constant 0 : index
    %45 = vector.load %arg3[%c7, %c0_40, %c0_41] : memref<9x8x128xbf16, #tpu.memory_space<vmem>>, vector<1x8x128xbf16>
    %46 = vector.shape_cast %45 : vector<1x8x128xbf16> to vector<8x128xbf16>
    %cst_42 = arith.constant dense<0.000000e+00> : vector<288x128xf32>
    %47 = tpu.matmul %44, %46, %cst_42 {dimension_numbers = #tpu.dot_dimension_numbers<[1], [0], [0], [1], [0, 0, 1, 1], [], []>} : vector<288x8xbf16>, vector<8x128xbf16>, vector<288x128xf32> -> vector<288x128xf32>
    %48 = arith.addf %42, %47 : vector<288x128xf32>
    %c0_43 = arith.constant 0 : index
    %c38 = arith.constant 38 : index
    %c0_44 = arith.constant 0 : index
    %49 = vector.load %arg2[%c0_43, %c38, %c0_44] : memref<1x328x8xbf16, #tpu.memory_space<vmem>>, vector<1x288x8xbf16>
    %50 = vector.shape_cast %49 : vector<1x288x8xbf16> to vector<288x8xbf16>
    %c8 = arith.constant 8 : index
    %c0_45 = arith.constant 0 : index
    %c0_46 = arith.constant 0 : index
    %51 = vector.load %arg3[%c8, %c0_45, %c0_46] : memref<9x8x128xbf16, #tpu.memory_space<vmem>>, vector<1x8x128xbf16>
    %52 = vector.shape_cast %51 : vector<1x8x128xbf16> to vector<8x128xbf16>
    %cst_47 = arith.constant dense<0.000000e+00> : vector<288x128xf32>
    %53 = tpu.matmul %50, %52, %cst_47 {dimension_numbers = #tpu.dot_dimension_numbers<[1], [0], [0], [1], [0, 0, 1, 1], [], []>} : vector<288x8xbf16>, vector<8x128xbf16>, vector<288x128xf32> -> vector<288x128xf32>
    %54 = arith.addf %48, %53 : vector<288x128xf32>
    %c0_48 = arith.constant 0 : index
    %c0_49 = arith.constant 0 : index
    %55 = vector.load %arg4[%c0_48, %c0_49] : memref<1x128xf32, #tpu.memory_space<vmem>>, vector<1x128xf32>
    %56 = vector.broadcast %55 : vector<1x128xf32> to vector<288x128xf32>
    %57 = arith.mulf %54, %56 : vector<288x128xf32>
    %c0_50 = arith.constant 0 : index
    %c0_51 = arith.constant 0 : index
    %58 = vector.load %arg5[%c0_50, %c0_51] : memref<1x128xf32, #tpu.memory_space<vmem>>, vector<1x128xf32>
    %59 = vector.broadcast %58 : vector<1x128xf32> to vector<288x128xf32>
    %60 = arith.addf %57, %59 : vector<288x128xf32>
    %cst_52 = arith.constant 0.000000e+00 : f32
    %61 = vector.broadcast %cst_52 : f32 to vector<288x128xf32>
    %62 = arith.maximumf %60, %61 : vector<288x128xf32>
    %63 = arith.truncf %62 : vector<288x128xf32> to vector<288x128xbf16>
    %c0_53 = arith.constant 0 : index
    %c0_54 = arith.constant 0 : index
    %c0_55 = arith.constant 0 : index
    %64 = vector.load %arg6[%c0_53, %c0_54, %c0_55] : memref<1x288x128xbf16, #tpu.memory_space<vmem>>, vector<1x288x128xbf16>
    %65 = vector.shape_cast %64 : vector<1x288x128xbf16> to vector<288x128xbf16>
    %66 = vector.shape_cast %63 : vector<288x128xbf16> to vector<1x288x128xbf16>
    tpu.vector_store %arg6[%c0_53, %c0_54, %c0_55], %66 {strides = array<i32>} : memref<1x288x128xbf16, #tpu.memory_space<vmem>>, vector<1x288x128xbf16>,
    return
  }
  func.func @transform_0(%arg0: i32, %arg1: i32) -> (i32, i32, i32) {
    %c0_i32 = arith.constant 0 : i32
    %c0_i32_0 = arith.constant 0 : i32
    %c0_i32_1 = arith.constant 0 : i32
    return %arg1, %c0_i32, %c0_i32_0 : i32, i32, i32
  }
  func.func @transform_1(%arg0: i32, %arg1: i32) -> (i32, i32, i32) {
    %c0_i32 = arith.constant 0 : i32
    %c0_i32_0 = arith.constant 0 : i32
    %c0_i32_1 = arith.constant 0 : i32
    return %c0_i32, %c0_i32_0, %arg0 : i32, i32, i32
  }
  func.func @transform_2(%arg0: i32, %arg1: i32) -> (i32, i32) {
    %c0_i32 = arith.constant 0 : i32
    %c0_i32_0 = arith.constant 0 : i32
    return %c0_i32, %arg0 : i32, i32
  }
  func.func @transform_3(%arg0: i32, %arg1: i32) -> (i32, i32) {
    %c0_i32 = arith.constant 0 : i32
    %c0_i32_0 = arith.constant 0 : i32
    return %c0_i32, %arg0 : i32, i32
  }
  func.func @transform_4(%arg0: i32, %arg1: i32) -> (i32, i32, i32) {
    %c0_i32 = arith.constant 0 : i32
    %c0_i32_0 = arith.constant 0 : i32
    return %arg1, %c0_i32, %arg0 : i32, i32, i32
  }
}

</mosaic_0001>

<llo_original>
// kernel: basic_block_1w4a_forward.1
$region0: #{basic_block_1w4a_forward.1}
  #allocation0 [shape = 'u32[]', space=smem, size = 0x4, offset = 0x4, fixed_abs, tag = 'smem constant byte address 0x4 - core index']
  #allocation1 [shape = 'u32[72,128]{1,0:T(1,128)}', space=vmem, size = 0x9000, scoped, tag = 'internal scratch']
  %s0 = inlined_call_operand.vmem [shape: bf16[2,328,8], index: 0, kind: input, shape index: {}]
  %s1 = inlined_call_operand.vmem [shape: bf16[9,8,128], index: 1, kind: input, shape index: {}]
  %s2 = inlined_call_operand.vmem [shape: f32[1,128], index: 2, kind: input, shape index: {}]
  %s3 = inlined_call_operand.vmem [shape: f32[1,128], index: 3, kind: input, shape index: {}]
  %s4 = inlined_call_operand.vmem [shape: bf16[2,288,128], index: 4, kind: output, shape index: {}]
  %s5 = sld [smem:[#allocation0]]
  $region49: #{basic_block_1w4a_forward.1} parent=0
    _
  %s7 = ssub.s32 1, %s5
  %s8 = scalar_select 0, %s7, %s5
  loop: start=0, step=1, limit=4
  $region2: #{basic_block_1w4a_forward.1} parent=0 // loop_pre_header
    _
  $region3: #{basic_block_1w4a_forward.1} parent=0 // loop_header
    %s10 = sphi 0, %s14
    %p11 = scmp.ge.s32.totalorder %s10, 4
    %s17 = sphi 0, %s29
    %s18 = sphi 0, %s25
    %s19 = sphi 0, %s17
    %s20 = sphi 0, %s18
    %s21 = sphi 0, %s19
    %s22 = sphi 0, %s20
    %s32 = sphi 0, %s34
    %s35 = sphi 0, %s32
    %s36 = sphi 0, %s35
    %s52 = sphi 0, %s36
    %s58 = sphi 0, %s60
    %s61 = sphi 0, %s58
    %s62 = sphi 0, %s61
    %s78 = sphi 0, %s62
    %s84 = sphi 0, %s86
    %s87 = sphi 0, %s84
    %s88 = sphi 0, %s87
    %s104 = sphi 0, %s88
    %s110 = sphi 0, %s112
    %s113 = sphi 0, %s110
    %s114 = sphi 0, %s113
    %s130 = sphi 0, %s114
    %s138 = sphi 0, %s140
    %s141 = sphi 0, %s138
    %s142 = sphi 0, %s141
    %s158 = sphi 0, %s142
  $region4: #{basic_block_1w4a_forward.1} parent=0 // loop_header_branch
    %13 = sbr.rel (%p11) target = $region8
  $region5: #{basic_block_1w4a_forward.1} parent=0 // loop_body
    %s15 = ssub.s32 %s10, 1
    %s16 = ssub.s32 %s10, 2
    %s23 = sadd.s32 1, %s18
    %p24 = scmp.ge.s32.totalorder %s23, 2
    %s25 = scalar_select %p24, 0, %s23
    %s26 = sadd.s32 1, %s17
    %s27 = scalar_select %p24, %s26, %s17
    %p28 = scmp.ge.s32.totalorder %s27, 1
    %s29 = scalar_select %p28, 0, %s27
    %s30 = ssub.s32 %s18, %s25
    %p31 = scmp.eq.s32.totalorder %s30, 0
    %s33 = sadd.s32 %s32, 1
    %s34 = scalar_select %p31, %s32, %s33
    %p37 = pneg %p31
    %p38 = scmp.eq.s32.totalorder %s10, 1
    %p39 = por %p37, %p38
    %p40 = scmp.ne.s32.totalorder %s32, %s35
    %p41 = scmp.eq.s32.totalorder %s10, 0
    %p42 = por %p40, %p41
    %p43 = scmp.ne.s32.totalorder %s32, %s35
    %p44 = scmp.eq.s32.totalorder %s15, 1
    %p45 = por %p43, %p44
    %p46 = scmp.ne.s32.totalorder %s35, %s36
    %p47 = scmp.eq.s32.totalorder %s15, 0
    %p48 = por %p46, %p47
    %p49 = scmp.ne.s32.totalorder %s35, %s36
    %p50 = scmp.eq.s32.totalorder %s16, 1
    %p51 = por %p49, %p50
    %p53 = scmp.ne.s32.totalorder %s36, %s52
    %p54 = scmp.eq.s32.totalorder %s16, 0
    %p55 = por %p53, %p54
    %s56 = ssub.s32 %s17, %s29
    %p57 = scmp.eq.s32.totalorder %s56, 0
    %s59 = sadd.s32 %s58, 1
    %s60 = scalar_select %p57, %s58, %s59
    %p63 = pneg %p57
    %p64 = scmp.eq.s32.totalorder %s10, 1
    %p65 = por %p63, %p64
    %p66 = scmp.ne.s32.totalorder %s58, %s61
    %p67 = scmp.eq.s32.totalorder %s10, 0
    %p68 = por %p66, %p67
    %p69 = scmp.ne.s32.totalorder %s58, %s61
    %p70 = scmp.eq.s32.totalorder %s15, 1
    %p71 = por %p69, %p70
    %p72 = scmp.ne.s32.totalorder %s61, %s62
    %p73 = scmp.eq.s32.totalorder %s15, 0
    %p74 = por %p72, %p73
    %p75 = scmp.ne.s32.totalorder %s61, %s62
    %p76 = scmp.eq.s32.totalorder %s16, 1
    %p77 = por %p75, %p76
    %p79 = scmp.ne.s32.totalorder %s62, %s78
    %p80 = scmp.eq.s32.totalorder %s16, 0
    %p81 = por %p79, %p80
    %s82 = ssub.s32 %s17, %s29
    %p83 = scmp.eq.s32.totalorder %s82, 0
    %s85 = sadd.s32 %s84, 1
    %s86 = scalar_select %p83, %s84, %s85
    %p89 = pneg %p83
    %p90 = scmp.eq.s32.totalorder %s10, 1
    %p91 = por %p89, %p90
    %p92 = scmp.ne.s32.totalorder %s84, %s87
    %p93 = scmp.eq.s32.totalorder %s10, 0
    %p94 = por %p92, %p93
    %p95 = scmp.ne.s32.totalorder %s84, %s87
    %p96 = scmp.eq.s32.totalorder %s15, 1
    %p97 = por %p95, %p96
    %p98 = scmp.ne.s32.totalorder %s87, %s88
    %p99 = scmp.eq.s32.totalorder %s15, 0
    %p100 = por %p98, %p99
    %p101 = scmp.ne.s32.totalorder %s87, %s88
    %p102 = scmp.eq.s32.totalorder %s16, 1
    %p103 = por %p101, %p102
    %p105 = scmp.ne.s32.totalorder %s88, %s104
    %p106 = scmp.eq.s32.totalorder %s16, 0
    %p107 = por %p105, %p106
    %s108 = ssub.s32 %s17, %s29
    %p109 = scmp.eq.s32.totalorder %s108, 0
    %s111 = sadd.s32 %s110, 1
    %s112 = scalar_select %p109, %s110, %s111
    %p115 = pneg %p109
    %p116 = scmp.eq.s32.totalorder %s10, 1
    %p117 = por %p115, %p116
    %p118 = scmp.ne.s32.totalorder %s110, %s113
    %p119 = scmp.eq.s32.totalorder %s10, 0
    %p120 = por %p118, %p119
    %p121 = scmp.ne.s32.totalorder %s110, %s113
    %p122 = scmp.eq.s32.totalorder %s15, 1
    %p123 = por %p121, %p122
    %p124 = scmp.ne.s32.totalorder %s113, %s114
    %p125 = scmp.eq.s32.totalorder %s15, 0
    %p126 = por %p124, %p125
    %p127 = scmp.ne.s32.totalorder %s113, %s114
    %p128 = scmp.eq.s32.totalorder %s16, 1
    %p129 = por %p127, %p128
    %p131 = scmp.ne.s32.totalorder %s114, %s130
    %p132 = scmp.eq.s32.totalorder %s16, 0
    %p133 = por %p131, %p132
    %s134 = ssub.s32 %s18, %s25
    %s135 = ssub.s32 %s17, %s29
    %s136 = sor.u32 %s134, %s135
    %p137 = scmp.eq.s32.totalorder %s136, 0
    %s139 = sadd.s32 %s138, 1
    %s140 = scalar_select %p137, %s138, %s139
    %p143 = pneg %p137
    %p144 = scmp.eq.s32.totalorder %s10, 1
    %p145 = por %p143, %p144
    %p146 = scmp.ne.s32.totalorder %s138, %s141
    %p147 = scmp.eq.s32.totalorder %s10, 0
    %p148 = por %p146, %p147
    %p149 = scmp.ne.s32.totalorder %s138, %s141
    %p150 = scmp.eq.s32.totalorder %s15, 1
    %p151 = por %p149, %p150
    %p152 = scmp.ne.s32.totalorder %s141, %s142
    %p153 = scmp.eq.s32.totalorder %s15, 0
    %p154 = por %p152, %p153
    %p155 = scmp.ne.s32.totalorder %s141, %s142
    %p156 = scmp.eq.s32.totalorder %s16, 1
    %p157 = por %p155, %p156
    %p159 = scmp.ne.s32.totalorder %s142, %s158
    %p160 = scmp.eq.s32.totalorder %s16, 0
    %p161 = por %p159, %p160
    %p162 = scmp.le.s32.totalorder 1, %s10
    %p163 = scmp.lt.s32.totalorder %s10, 3
    %p164 = pnand %p162, %p163
    %p165 = pneg %p164
    // Predicated region
    $region9: #{basic_block_1w4a_forward.1} parent=5 // pred_check
      _
    $region10: #{basic_block_1w4a_forward.1} parent=5 // pred_check_branch
      %167 = sbr.rel (%p164) target = $region12
    $region11: #{basic_block_1w4a_forward.1} parent=5 // pred_region
      %s168 = ssub.s32 %s10, 1
      // Predicated region
      $region13: #{basic_block_1w4a_forward.1} parent=11 // pred_check
        %p169 = pneg %p74
      $region14: #{basic_block_1w4a_forward.1} parent=11 // pred_check_branch
        %171 = sbr.rel (%p169) target = $region16
      $region15: #{basic_block_1w4a_forward.1} parent=11 // pred_region
        %p172 = scmp.lt.s32.totalorder %s19, 0
        %s173 = scalar_select %p172, %s19, 0
        %s174 = smul.addr %s173, 4
        %s175 = scalar_lea.vmem %s1, %s174
      $region16: #{basic_block_1w4a_forward.1} parent=11 // pred_fallthru
        _
      // Predicated region
      $region17: #{basic_block_1w4a_forward.1} parent=11 // pred_check
        %p176 = pneg %p100
      $region18: #{basic_block_1w4a_forward.1} parent=11 // pred_check_branch
        %178 = sbr.rel (%p176) target = $region20
      $region19: #{basic_block_1w4a_forward.1} parent=11 // pred_region
        %p179 = scmp.lt.s32.totalorder %s19, 0
        %s180 = scalar_select %p179, %s19, 0
        %s181 = scalar_lea.vmem %s2, %s180
      $region20: #{basic_block_1w4a_forward.1} parent=11 // pred_fallthru
        _
      // Predicated region
      $region21: #{basic_block_1w4a_forward.1} parent=11 // pred_check
        %p182 = pneg %p126
      $region22: #{basic_block_1w4a_forward.1} parent=11 // pred_check_branch
        %184 = sbr.rel (%p182) target = $region24
      $region23: #{basic_block_1w4a_forward.1} parent=11 // pred_region
        %p185 = scmp.lt.s32.totalorder %s19, 0
        %s186 = scalar_select %p185, %s19, 0
        %s187 = scalar_lea.vmem %s3, %s186
      $region24: #{basic_block_1w4a_forward.1} parent=11 // pred_fallthru
        _
    $region12: #{basic_block_1w4a_forward.1} parent=5 // pred_fallthru
      _
    %p188 = scmp.lt.s32.totalorder %s10, 2
    // Predicated region
    $region25: #{basic_block_1w4a_forward.1} parent=5 // pred_check
      %p189 = pneg %p188
    $region26: #{basic_block_1w4a_forward.1} parent=5 // pred_check_branch
      %191 = sbr.rel (%p189) target = $region28
    $region27: #{basic_block_1w4a_forward.1} parent=5 // pred_region
      // Predicated region
      $region29: #{basic_block_1w4a_forward.1} parent=27 // pred_check
        %p192 = pneg %p42
      $region30: #{basic_block_1w4a_forward.1} parent=27 // pred_check_branch
        %194 = sbr.rel (%p192) target = $region32
      $region31: #{basic_block_1w4a_forward.1} parent=27 // pred_region
        %p195 = scmp.lt.s32.totalorder %s18, 1
        %s196 = scalar_select %p195, %s18, 1
        %s197 = smul.addr %s196, 41
        %s198 = smul.addr %s197, 4
        %s199 = scalar_lea.vmem %s0, %s198
      $region32: #{basic_block_1w4a_forward.1} parent=27 // pred_fallthru
        _
    $region28: #{basic_block_1w4a_forward.1} parent=5 // pred_fallthru
      _
    %p200 = scmp.le.s32.totalorder 1, %s10
    %p201 = scmp.lt.s32.totalorder %s10, 3
    %p202 = pnand %p200, %p201
    %p203 = pneg %p202
    // Predicated region
    $region33: #{basic_block_1w4a_forward.1} parent=5 // pred_check
      _
    $region34: #{basic_block_1w4a_forward.1} parent=5 // pred_check_branch
      %205 = sbr.rel (%p202) target = $region36
    $region35: #{basic_block_1w4a_forward.1} parent=5 // pred_region
      %s206 = ssub.s32 %s10, 1
      %p207 = scmp.lt.s32.totalorder %s20, 1
      %s208 = scalar_select %p207, %s20, 1
      %s209 = smul.addr %s208, 41
      %s210 = smul.addr %s209, 4
      %s211 = scalar_lea.vmem %s0, %s210
      %p212 = pneg %p48
      %p213 = pneg %p45
      %p214 = scmp.lt.s32.totalorder %s19, 0
      %s215 = scalar_select %p214, %s19, 0
      %s216 = smul.addr %s215, 4
      %s217 = scalar_lea.vmem %s1, %s216
      %p218 = pneg %p74
      %p219 = pneg %p71
      %p220 = scmp.lt.s32.totalorder %s19, 0
      %s221 = scalar_select %p220, %s19, 0
      %s222 = scalar_lea.vmem %s2, %s221
      %p223 = pneg %p100
      %p224 = pneg %p97
      %p225 = scmp.lt.s32.totalorder %s19, 0
      %s226 = scalar_select %p225, %s19, 0
      %s227 = scalar_lea.vmem %s3, %s226
      %p228 = pneg %p126
      %p229 = pneg %p123
      %p230 = pneg %p154
      %p231 = pneg %p151
      %p232 = scmp.lt.s32.totalorder %s20, 1
      %s233 = scalar_select %p232, %s20, 1
      %p234 = scmp.lt.s32.totalorder %s19, 0
      %s235 = scalar_select %p234, %s19, 0
      %s236 = smul.addr %s233, 36
      %s237 = sadd.s32 %s235, %s236
      %s238 = smul.addr %s237, 4
      %s239 = scalar_lea.vmem %s4, %s238
      %p240 = scmp.lt.s32.totalorder %s20, 1
      %s241 = scalar_select %p240, %s20, 1
      %s242 = smul.addr %s241, 41
      %s243 = smul.addr %s242, 4
      %s244 = scalar_lea.vmem %s0, %s243
      %p245 = scmp.lt.s32.totalorder %s19, 0
      %s246 = scalar_select %p245, %s19, 0
      %s247 = smul.addr %s246, 4
      %s248 = scalar_lea.vmem %s1, %s247
      %p249 = scmp.lt.s32.totalorder %s19, 0
      %s250 = scalar_select %p249, %s19, 0
      %s251 = scalar_lea.vmem %s2, %s250
      %p252 = scmp.lt.s32.totalorder %s19, 0
      %s253 = scalar_select %p252, %s19, 0
      %s254 = scalar_lea.vmem %s3, %s253
      %p255 = scmp.lt.s32.totalorder %s20, 1
      %s256 = scalar_select %p255, %s20, 1
      %p257 = scmp.lt.s32.totalorder %s19, 0
      %s258 = scalar_select %p257, %s19, 0
      %s259 = smul.addr %s256, 36
      %s260 = sadd.s32 %s258, %s259
      %s261 = smul.addr %s260, 4
      %s262 = scalar_lea.vmem %s4, %s261
      %v264 = vld [vmem:[%s244] sm:$0xf]
      %v265 = vld [vmem:[%s244 + $0x4] sm:$0xf]
      %v266 = vld [vmem:[%s244 + $0x8] sm:$0xf]
      %v267 = vld [vmem:[%s244 + $0xc] sm:$0xf]
      %v268 = vld [vmem:[%s244 + $0x10] sm:$0xf]
      %v269 = vld [vmem:[%s244 + $0x14] sm:$0xf]
      %v270 = vld [vmem:[%s244 + $0x18] sm:$0xf]
      %v271 = vld [vmem:[%s244 + $0x1c] sm:$0xf]
      %v272 = vld [vmem:[%s244 + $0x20] sm:$0xf]
      %v273 = vld [vmem:[%s244 + $0x24] sm:$0xf]
      %v274 = vld [vmem:[%s244 + $0x28] sm:$0xf]
      %v275 = vld [vmem:[%s244 + $0x2c] sm:$0xf]
      %v276 = vld [vmem:[%s244 + $0x30] sm:$0xf]
      %v277 = vld [vmem:[%s244 + $0x34] sm:$0xf]
      %v278 = vld [vmem:[%s244 + $0x38] sm:$0xf]
      %v279 = vld [vmem:[%s244 + $0x3c] sm:$0xf]
      %v280 = vld [vmem:[%s244 + $0x40] sm:$0xf]
      %v281 = vld [vmem:[%s244 + $0x44] sm:$0xf]
      %v282 = vld [vmem:[%s244 + $0x48] sm:$0xf]
      %v283 = vld [vmem:[%s244 + $0x4c] sm:$0xf]
      %v284 = vld [vmem:[%s244 + $0x50] sm:$0xf]
      %v285 = vld [vmem:[%s244 + $0x54] sm:$0xf]
      %v286 = vld [vmem:[%s244 + $0x58] sm:$0xf]
      %v287 = vld [vmem:[%s244 + $0x5c] sm:$0xf]
      %v288 = vld [vmem:[%s244 + $0x60] sm:$0xf]
      %v289 = vld [vmem:[%s244 + $0x64] sm:$0xf]
      %v290 = vld [vmem:[%s244 + $0x68] sm:$0xf]
      %v291 = vld [vmem:[%s244 + $0x6c] sm:$0xf]
      %v292 = vld [vmem:[%s244 + $0x70] sm:$0xf]
      %v293 = vld [vmem:[%s244 + $0x74] sm:$0xf]
      %v294 = vld [vmem:[%s244 + $0x78] sm:$0xf]
      %v295 = vld [vmem:[%s244 + $0x7c] sm:$0xf]
      %v296 = vld [vmem:[%s244 + $0x80] sm:$0xf]
      %v297 = vld [vmem:[%s244 + $0x84] sm:$0xf]
      %v298 = vld [vmem:[%s244 + $0x88] sm:$0xf]
      %v299 = vld [vmem:[%s244 + $0x8c] sm:$0xf]
      %v300 = vld [vmem:[%s248] sm:$0xf]
      %v301 = vld [vmem:[%s244 + $0x90] sm:$0x1]
      %s302 = scalar_lea.vmem %s248, 4
      %v303 = vld [vmem:[%s302] sm:$0xf]
      %v341 = vunpack.c.l.b16 %v264
      %v342 = vunpack.c.l.b16 %v265
      %v343 = vunpack.c.l.b16 %v266
      %v344 = vunpack.c.l.b16 %v267
      %v345 = vunpack.c.l.b16 %v268
      %v346 = vunpack.c.l.b16 %v269
      %v347 = vunpack.c.l.b16 %v270
      %v348 = vunpack.c.l.b16 %v271
      %v349 = vunpack.c.l.b16 %v272
      %v350 = vunpack.c.l.b16 %v273
      %v351 = vunpack.c.l.b16 %v274
      %v352 = vunpack.c.l.b16 %v275
      %v353 = vunpack.c.l.b16 %v276
      %v354 = vunpack.c.l.b16 %v277
      %v355 = vunpack.c.l.b16 %v278
      %v356 = vunpack.c.l.b16 %v279
      %v357 = vunpack.c.l.b16 %v280
      %v358 = vunpack.c.l.b16 %v281
      %v359 = vunpack.c.l.b16 %v282
      %v360 = vunpack.c.l.b16 %v283
      %v361 = vunpack.c.l.b16 %v284
      %v362 = vunpack.c.l.b16 %v285
      %v363 = vunpack.c.l.b16 %v286
      %v364 = vunpack.c.l.b16 %v287
      %v365 = vunpack.c.l.b16 %v288
      %v366 = vunpack.c.l.b16 %v289
      %v367 = vunpack.c.l.b16 %v290
      %v368 = vunpack.c.l.b16 %v291
      %v369 = vunpack.c.l.b16 %v292
      %v370 = vunpack.c.l.b16 %v293
      %v371 = vunpack.c.l.b16 %v294
      %v372 = vunpack.c.l.b16 %v295
      %v373 = vunpack.c.l.b16 %v296
      %v374 = vunpack.c.l.b16 %v297
      %v375 = vunpack.c.l.b16 %v298
      %v376 = vunpack.c.l.b16 %v299
      %v377 = vunpack.c.l.b16 %v301
      %v378 = vpack.c.b16 %v342, %v341
      %v379 = vpack.c.b16 %v344, %v343
      %v380 = vpack.c.b16 %v346, %v345
      %v381 = vpack.c.b16 %v348, %v347
      %v382 = vpack.c.b16 %v350, %v349
      %v383 = vpack.c.b16 %v352, %v351
      %v384 = vpack.c.b16 %v354, %v353
      %v385 = vpack.c.b16 %v356, %v355
      %v386 = vpack.c.b16 %v358, %v357
      %v387 = vpack.c.b16 %v360, %v359
      %v388 = vpack.c.b16 %v362, %v361
      %v389 = vpack.c.b16 %v364, %v363
      %v390 = vpack.c.b16 %v366, %v365
      %v391 = vpack.c.b16 %v368, %v367
      %v392 = vpack.c.b16 %v370, %v369
      %v393 = vpack.c.b16 %v372, %v371
      %v394 = vpack.c.b16 %v374, %v373
      %v395 = vpack.c.b16 %v376, %v375
      %v396 = vpack.c.b16 %v377, %v377
      %vm397 = vsmask.f32 7424
      %v399 = vshrl.u32 %v378, 16
      %v401 = vshll.u32 %v378, 16
      %v403 = vrot.slane %v401, 1
      %v404 = vor.u32 %v399, %v403
      %v406 = vshll.u32 %v379, 16
      %v408 = vrot.slane %v406, 1
      %v409 = vsel %vm397, %v404, %v408
      %v410 = vshrl.u32 %v379, 16
      %v412 = vor.u32 %v410, %v408
      %v414 = vshll.u32 %v380, 16
      %v416 = vrot.slane %v414, 1
      %v417 = vsel %vm397, %v412, %v416
      %v418 = vshrl.u32 %v380, 16
      %v420 = vor.u32 %v418, %v416
      %v422 = vshll.u32 %v381, 16
      %v424 = vrot.slane %v422, 1
      %v425 = vsel %vm397, %v420, %v424
      %v426 = vshrl.u32 %v381, 16
      %v428 = vor.u32 %v426, %v424
      %v430 = vshll.u32 %v382, 16
      %v432 = vrot.slane %v430, 1
      %v433 = vsel %vm397, %v428, %v432
      %v434 = vshrl.u32 %v382, 16
      %v436 = vor.u32 %v434, %v432
      %v438 = vshll.u32 %v383, 16
      %v440 = vrot.slane %v438, 1
      %v441 = vsel %vm397, %v436, %v440
      %v442 = vshrl.u32 %v383, 16
      %v444 = vor.u32 %v442, %v440
      %v446 = vshll.u32 %v384, 16
      %v448 = vrot.slane %v446, 1
      %v449 = vsel %vm397, %v444, %v448
      %v450 = vshrl.u32 %v384, 16
      %v452 = vor.u32 %v450, %v448
      %v454 = vshll.u32 %v385, 16
      %v456 = vrot.slane %v454, 1
      %v457 = vsel %vm397, %v452, %v456
      %v458 = vshrl.u32 %v385, 16
      %v460 = vor.u32 %v458, %v456
      %v462 = vshll.u32 %v386, 16
      %v464 = vrot.slane %v462, 1
      %v465 = vsel %vm397, %v460, %v464
      %v466 = vshrl.u32 %v386, 16
      %v468 = vor.u32 %v466, %v464
      %v470 = vshll.u32 %v387, 16
      %v472 = vrot.slane %v470, 1
      %v473 = vsel %vm397, %v468, %v472
      %v474 = vshrl.u32 %v387, 16
      %v476 = vor.u32 %v474, %v472
      %v478 = vshll.u32 %v388, 16
      %v480 = vrot.slane %v478, 1
      %v481 = vsel %vm397, %v476, %v480
      %v482 = vshrl.u32 %v388, 16
      %v484 = vor.u32 %v482, %v480
      %v486 = vshll.u32 %v389, 16
      %v488 = vrot.slane %v486, 1
      %v489 = vsel %vm397, %v484, %v488
      %v490 = vshrl.u32 %v389, 16
      %v492 = vor.u32 %v490, %v488
      %v494 = vshll.u32 %v390, 16
      %v496 = vrot.slane %v494, 1
      %v497 = vsel %vm397, %v492, %v496
      %v498 = vshrl.u32 %v390, 16
      %v500 = vor.u32 %v498, %v496
      %v502 = vshll.u32 %v391, 16
      %v504 = vrot.slane %v502, 1
      %v505 = vsel %vm397, %v500, %v504
      %v506 = vshrl.u32 %v391, 16
      %v508 = vor.u32 %v506, %v504
      %v510 = vshll.u32 %v392, 16
      %v512 = vrot.slane %v510, 1
      %v513 = vsel %vm397, %v508, %v512
      %v514 = vshrl.u32 %v392, 16
      %v516 = vor.u32 %v514, %v512
      %v518 = vshll.u32 %v393, 16
      %v520 = vrot.slane %v518, 1
      %v521 = vsel %vm397, %v516, %v520
      %v522 = vshrl.u32 %v393, 16
      %v524 = vor.u32 %v522, %v520
      %v526 = vshll.u32 %v394, 16
      %v528 = vrot.slane %v526, 1
      %v529 = vsel %vm397, %v524, %v528
      %v530 = vshrl.u32 %v394, 16
      %v532 = vor.u32 %v530, %v528
      %v534 = vshll.u32 %v395, 16
      %v536 = vrot.slane %v534, 1
      %v537 = vsel %vm397, %v532, %v536
      %v538 = vshrl.u32 %v395, 16
      %v540 = vor.u32 %v538, %v536
      %v542 = vshll.u32 %v396, 16
      %v544 = vrot.slane %v542, 1
      %v545 = vsel %vm397, %v540, %v544
      %vm546 = vcmask 64512
      %v548 = vsel %vm546, %v409, 0
      %v551 = vsel %vm546, %v417, 0
      %v554 = vsel %vm546, %v425, 0
      %v557 = vsel %vm546, %v433, 0
      %v560 = vsel %vm546, %v441, 0
      %v563 = vsel %vm546, %v449, 0
      %v566 = vsel %vm546, %v457, 0
      %v569 = vsel %vm546, %v465, 0
      %v572 = vsel %vm546, %v473, 0
      %v575 = vsel %vm546, %v481, 0
      %v578 = vsel %vm546, %v489, 0
      %v581 = vsel %vm546, %v497, 0
      %v584 = vsel %vm546, %v505, 0
      %v587 = vsel %vm546, %v513, 0
      %v590 = vsel %vm546, %v521, 0
      %v593 = vsel %vm546, %v529, 0
      %v596 = vsel %vm546, %v537, 0
      %v599 = vsel %vm546, %v545, 0
      %vm601 = vcmask 1043456
      %v603 = vsel %vm601, %v303, 0
      %605 = vmatpush.bf16.msra.mxu0 0
      %606 = vmatpush.bf16.msra.mxu0 0
      %607 = vmatpush.bf16.msra.mxu0 0
      %608 = vmatpush.bf16.msra.mxu0 0
      %609 = vmatpush.bf16.msra.mxu0 0
      %610 = vmatpush.bf16.msra.mxu0 0
      %611 = vmatpush.bf16.msra.mxu0 0
      %612 = vmatpush.bf16.msra.mxu0 %v603
      %613 = vmatmul.bf16.gmra.mxu0 %v548
      %v614 = vpop.f32.mrf.mxu0
      %v615 = vadd.f32 0.0, %v614
      %v616 = vpop.f32.mrf.mxu0
      %v617 = vadd.f32 0.0, %v616
      %618 = vmatmul.bf16.gmra.mxu0 %v551
      %v619 = vpop.f32.mrf.mxu0
      %v620 = vadd.f32 0.0, %v619
      %v621 = vpop.f32.mrf.mxu0
      %v622 = vadd.f32 0.0, %v621
      %623 = vmatmul.bf16.gmra.mxu0 %v554
      %v624 = vpop.f32.mrf.mxu0
      %v625 = vadd.f32 0.0, %v624
      %v626 = vpop.f32.mrf.mxu0
      %v627 = vadd.f32 0.0, %v626
      %628 = vmatmul.bf16.gmra.mxu0 %v557
      %v629 = vpop.f32.mrf.mxu0
      %v630 = vadd.f32 0.0, %v629
      %v631 = vpop.f32.mrf.mxu0
      %v632 = vadd.f32 0.0, %v631
      %633 = vmatmul.bf16.gmra.mxu0 %v560
      %v634 = vpop.f32.mrf.mxu0
      %v635 = vadd.f32 0.0, %v634
      %v636 = vpop.f32.mrf.mxu0
      %v637 = vadd.f32 0.0, %v636
      %638 = vmatmul.bf16.gmra.mxu0 %v563
      %v639 = vpop.f32.mrf.mxu0
      %v640 = vadd.f32 0.0, %v639
      %v641 = vpop.f32.mrf.mxu0
      %v642 = vadd.f32 0.0, %v641
      %643 = vmatmul.bf16.gmra.mxu0 %v566
      %v644 = vpop.f32.mrf.mxu0
      %v645 = vadd.f32 0.0, %v644
      %v646 = vpop.f32.mrf.mxu0
      %v647 = vadd.f32 0.0, %v646
      %648 = vmatmul.bf16.gmra.mxu0 %v569
      %v649 = vpop.f32.mrf.mxu0
      %v650 = vadd.f32 0.0, %v649
      %v651 = vpop.f32.mrf.mxu0
      %v652 = vadd.f32 0.0, %v651
      %653 = vmatmul.bf16.gmra.mxu0 %v572
      %v654 = vpop.f32.mrf.mxu0
      %v655 = vadd.f32 0.0, %v654
      %v656 = vpop.f32.mrf.mxu0
      %v657 = vadd.f32 0.0, %v656
      %658 = vmatmul.bf16.gmra.mxu0 %v575
      %v659 = vpop.f32.mrf.mxu0
      %v660 = vadd.f32 0.0, %v659
      %v661 = vpop.f32.mrf.mxu0
      %v662 = vadd.f32 0.0, %v661
      %663 = vmatmul.bf16.gmra.mxu0 %v578
      %v664 = vpop.f32.mrf.mxu0
      %v665 = vadd.f32 0.0, %v664
      %v666 = vpop.f32.mrf.mxu0
      %v667 = vadd.f32 0.0, %v666
      %668 = vmatmul.bf16.gmra.mxu0 %v581
      %v669 = vpop.f32.mrf.mxu0
      %v670 = vadd.f32 0.0, %v669
      %v671 = vpop.f32.mrf.mxu0
      %v672 = vadd.f32 0.0, %v671
      %673 = vmatmul.bf16.gmra.mxu0 %v584
      %v674 = vpop.f32.mrf.mxu0
      %v675 = vadd.f32 0.0, %v674
      %v676 = vpop.f32.mrf.mxu0
      %v677 = vadd.f32 0.0, %v676
      %678 = vmatmul.bf16.gmra.mxu0 %v587
      %v679 = vpop.f32.mrf.mxu0
      %v680 = vadd.f32 0.0, %v679
      %v681 = vpop.f32.mrf.mxu0
      %v682 = vadd.f32 0.0, %v681
      %683 = vmatmul.bf16.gmra.mxu0 %v590
      %v684 = vpop.f32.mrf.mxu0
      %v685 = vadd.f32 0.0, %v684
      %v686 = vpop.f32.mrf.mxu0
      %v687 = vadd.f32 0.0, %v686
      %688 = vmatmul.bf16.gmra.mxu0 %v593
      %v689 = vpop.f32.mrf.mxu0
      %v690 = vadd.f32 0.0, %v689
      %v691 = vpop.f32.mrf.mxu0
      %v692 = vadd.f32 0.0, %v691
      %693 = vmatmul.bf16.gmra.mxu0 %v596
      %v694 = vpop.f32.mrf.mxu0
      %v695 = vadd.f32 0.0, %v694
      %v696 = vpop.f32.mrf.mxu0
      %v697 = vadd.f32 0.0, %v696
      %698 = vmatmul.bf16.gmra.mxu0 %v599
      %v699 = vpop.f32.mrf.mxu0
      %v700 = vadd.f32 0.0, %v699
      %v701 = vpop.f32.mrf.mxu0
      %v702 = vadd.f32 0.0, %v701
      %703 = vdwg.mxu0
      %v704 = vsel %vm546, %v378, 0
      %v706 = vsel %vm546, %v379, 0
      %v708 = vsel %vm546, %v380, 0
      %v710 = vsel %vm546, %v381, 0
      %v712 = vsel %vm546, %v382, 0
      %v714 = vsel %vm546, %v383, 0
      %v716 = vsel %vm546, %v384, 0
      %v718 = vsel %vm546, %v385, 0
      %v720 = vsel %vm546, %v386, 0
      %v722 = vsel %vm546, %v387, 0
      %v724 = vsel %vm546, %v388, 0
      %v726 = vsel %vm546, %v389, 0
      %v728 = vsel %vm546, %v390, 0
      %v730 = vsel %vm546, %v391, 0
      %v732 = vsel %vm546, %v392, 0
      %v734 = vsel %vm546, %v393, 0
      %v736 = vsel %vm546, %v394, 0
      %v738 = vsel %vm546, %v395, 0
      %v741 = vsel %vm601, %v300, 0
      %743 = vmatpush.bf16.msra.mxu0 0
      %744 = vmatpush.bf16.msra.mxu0 0
      %745 = vmatpush.bf16.msra.mxu0 0
      %746 = vmatpush.bf16.msra.mxu0 0
      %747 = vmatpush.bf16.msra.mxu0 0
      %748 = vmatpush.bf16.msra.mxu0 0
      %749 = vmatpush.bf16.msra.mxu0 0
      %750 = vmatpush.bf16.msra.mxu0 %v741
      %751 = vmatmul.bf16.gmra.mxu0 %v704
      %v752 = vpop.f32.mrf.mxu0
      %v753 = vadd.f32 %v615, %v752
      %v754 = vpop.f32.mrf.mxu0
      %v755 = vadd.f32 %v617, %v754
      %756 = vmatmul.bf16.gmra.mxu0 %v706
      %v757 = vpop.f32.mrf.mxu0
      %v758 = vadd.f32 %v620, %v757
      %v759 = vpop.f32.mrf.mxu0
      %v760 = vadd.f32 %v622, %v759
      %761 = vmatmul.bf16.gmra.mxu0 %v708
      %v762 = vpop.f32.mrf.mxu0
      %v763 = vadd.f32 %v625, %v762
      %v764 = vpop.f32.mrf.mxu0
      %v765 = vadd.f32 %v627, %v764
      %766 = vmatmul.bf16.gmra.mxu0 %v710
      %v767 = vpop.f32.mrf.mxu0
      %v768 = vadd.f32 %v630, %v767
      %v769 = vpop.f32.mrf.mxu0
      %v770 = vadd.f32 %v632, %v769
      %771 = vmatmul.bf16.gmra.mxu0 %v712
      %v772 = vpop.f32.mrf.mxu0
      %v773 = vadd.f32 %v635, %v772
      %v774 = vpop.f32.mrf.mxu0
      %v775 = vadd.f32 %v637, %v774
      %776 = vmatmul.bf16.gmra.mxu0 %v714
      %v777 = vpop.f32.mrf.mxu0
      %v778 = vadd.f32 %v640, %v777
      %v779 = vpop.f32.mrf.mxu0
      %v780 = vadd.f32 %v642, %v779
      %781 = vmatmul.bf16.gmra.mxu0 %v716
      %v782 = vpop.f32.mrf.mxu0
      %v783 = vadd.f32 %v645, %v782
      %v784 = vpop.f32.mrf.mxu0
      %v785 = vadd.f32 %v647, %v784
      %786 = vmatmul.bf16.gmra.mxu0 %v718
      %v787 = vpop.f32.mrf.mxu0
      %v788 = vadd.f32 %v650, %v787
      %v789 = vpop.f32.mrf.mxu0
      %v790 = vadd.f32 %v652, %v789
      %791 = vmatmul.bf16.gmra.mxu0 %v720
      %v792 = vpop.f32.mrf.mxu0
      %v793 = vadd.f32 %v655, %v792
      %v794 = vpop.f32.mrf.mxu0
      %v795 = vadd.f32 %v657, %v794
      %796 = vmatmul.bf16.gmra.mxu0 %v722
      %v797 = vpop.f32.mrf.mxu0
      %v798 = vadd.f32 %v660, %v797
      %v799 = vpop.f32.mrf.mxu0
      %v800 = vadd.f32 %v662, %v799
      %801 = vmatmul.bf16.gmra.mxu0 %v724
      %v802 = vpop.f32.mrf.mxu0
      %v803 = vadd.f32 %v665, %v802
      %v804 = vpop.f32.mrf.mxu0
      %v805 = vadd.f32 %v667, %v804
      %806 = vmatmul.bf16.gmra.mxu0 %v726
      %v807 = vpop.f32.mrf.mxu0
      %v808 = vadd.f32 %v670, %v807
      %v809 = vpop.f32.mrf.mxu0
      %v810 = vadd.f32 %v672, %v809
      %811 = vmatmul.bf16.gmra.mxu0 %v728
      %v812 = vpop.f32.mrf.mxu0
      %v813 = vadd.f32 %v675, %v812
      %v814 = vpop.f32.mrf.mxu0
      %v815 = vadd.f32 %v677, %v814
      %816 = vmatmul.bf16.gmra.mxu0 %v730
      %v817 = vpop.f32.mrf.mxu0
      %v818 = vadd.f32 %v680, %v817
      %v819 = vpop.f32.mrf.mxu0
      %v820 = vadd.f32 %v682, %v819
      %821 = vmatmul.bf16.gmra.mxu0 %v732
      %v822 = vpop.f32.mrf.mxu0
      %v823 = vadd.f32 %v685, %v822
      %v824 = vpop.f32.mrf.mxu0
      %v825 = vadd.f32 %v687, %v824
      %826 = vmatmul.bf16.gmra.mxu0 %v734
      %v827 = vpop.f32.mrf.mxu0
      %v828 = vadd.f32 %v690, %v827
      %v829 = vpop.f32.mrf.mxu0
      %v830 = vadd.f32 %v692, %v829
      %831 = vmatmul.bf16.gmra.mxu0 %v736
      %v832 = vpop.f32.mrf.mxu0
      %v833 = vadd.f32 %v695, %v832
      %v834 = vpop.f32.mrf.mxu0
      %v835 = vadd.f32 %v697, %v834
      %836 = vmatmul.bf16.gmra.mxu0 %v738
      %v837 = vpop.f32.mrf.mxu0
      %v838 = vadd.f32 %v700, %v837
      %v839 = vpop.f32.mrf.mxu0
      %v840 = vadd.f32 %v702, %v839
      %841 = vdwg.mxu0
      %v842 = vld [vmem:[%s244] sm:$0xe]
      %s843 = scalar_lea.vmem %s248, 8
      %v844 = vld [vmem:[%s843] sm:$0xf]
      %v846 = vunpack.c.l.b16 %v842
      %v847 = vpack.c.b16 %v342, %v846
      %vm848 = vcmask 1046528
      %v849 = vrot.slane %v847, 1
      %v850 = vrot.slane %v379, 1
      %v851 = vsel %vm848, %v849, %v850
      %v852 = vrot.slane %v380, 1
      %v853 = vsel %vm848, %v850, %v852
      %v854 = vrot.slane %v381, 1
      %v855 = vsel %vm848, %v852, %v854
      %v856 = vrot.slane %v382, 1
      %v857 = vsel %vm848, %v854, %v856
      %v858 = vrot.slane %v383, 1
      %v859 = vsel %vm848, %v856, %v858
      %v860 = vrot.slane %v384, 1
      %v861 = vsel %vm848, %v858, %v860
      %v862 = vrot.slane %v385, 1
      %v863 = vsel %vm848, %v860, %v862
      %v864 = vrot.slane %v386, 1
      %v865 = vsel %vm848, %v862, %v864
      %v866 = vrot.slane %v387, 1
      %v867 = vsel %vm848, %v864, %v866
      %v868 = vrot.slane %v388, 1
      %v869 = vsel %vm848, %v866, %v868
      %v870 = vrot.slane %v389, 1
      %v871 = vsel %vm848, %v868, %v870
      %v872 = vrot.slane %v390, 1
      %v873 = vsel %vm848, %v870, %v872
      %v874 = vrot.slane %v391, 1
      %v875 = vsel %vm848, %v872, %v874
      %v876 = vrot.slane %v392, 1
      %v877 = vsel %vm848, %v874, %v876
      %v878 = vrot.slane %v393, 1
      %v879 = vsel %vm848, %v876, %v878
      %v880 = vrot.slane %v394, 1
      %v881 = vsel %vm848, %v878, %v880
      %v882 = vrot.slane %v395, 1
      %v883 = vsel %vm848, %v880, %v882
      %v884 = vrot.slane %v396, 1
      %v885 = vsel %vm848, %v882, %v884
      %v887 = vsel %vm546, %v851, 0
      %v890 = vsel %vm546, %v853, 0
      %v893 = vsel %vm546, %v855, 0
      %v896 = vsel %vm546, %v857, 0
      %v899 = vsel %vm546, %v859, 0
      %v902 = vsel %vm546, %v861, 0
      %v905 = vsel %vm546, %v863, 0
      %v908 = vsel %vm546, %v865, 0
      %v911 = vsel %vm546, %v867, 0
      %v914 = vsel %vm546, %v869, 0
      %v917 = vsel %vm546, %v871, 0
      %v920 = vsel %vm546, %v873, 0
      %v923 = vsel %vm546, %v875, 0
      %v926 = vsel %vm546, %v877, 0
      %v929 = vsel %vm546, %v879, 0
      %v932 = vsel %vm546, %v881, 0
      %v935 = vsel %vm546, %v883, 0
      %v938 = vsel %vm546, %v885, 0
      %v941 = vsel %vm601, %v844, 0
      %943 = vmatpush.bf16.msra.mxu0 0
      %944 = vmatpush.bf16.msra.mxu0 0
      %945 = vmatpush.bf16.msra.mxu0 0
      %946 = vmatpush.bf16.msra.mxu0 0
      %947 = vmatpush.bf16.msra.mxu0 0
      %948 = vmatpush.bf16.msra.mxu0 0
      %949 = vmatpush.bf16.msra.mxu0 0
      %950 = vmatpush.bf16.msra.mxu0 %v941
      %951 = vmatmul.bf16.gmra.mxu0 %v887
      %v952 = vpop.f32.mrf.mxu0
      %v953 = vadd.f32 0.0, %v952
      %v954 = vpop.f32.mrf.mxu0
      %v955 = vadd.f32 0.0, %v954
      %956 = vmatmul.bf16.gmra.mxu0 %v890
      %v957 = vpop.f32.mrf.mxu0
      %v958 = vadd.f32 0.0, %v957
      %v959 = vpop.f32.mrf.mxu0
      %v960 = vadd.f32 0.0, %v959
      %961 = vmatmul.bf16.gmra.mxu0 %v893
      %v962 = vpop.f32.mrf.mxu0
      %v963 = vadd.f32 0.0, %v962
      %v964 = vpop.f32.mrf.mxu0
      %v965 = vadd.f32 0.0, %v964
      %966 = vmatmul.bf16.gmra.mxu0 %v896
      %v967 = vpop.f32.mrf.mxu0
      %v968 = vadd.f32 0.0, %v967
      %v969 = vpop.f32.mrf.mxu0
      %v970 = vadd.f32 0.0, %v969
      %971 = vmatmul.bf16.gmra.mxu0 %v899
      %v972 = vpop.f32.mrf.mxu0
      %v973 = vadd.f32 0.0, %v972
      %v974 = vpop.f32.mrf.mxu0
      %v975 = vadd.f32 0.0, %v974
      %976 = vmatmul.bf16.gmra.mxu0 %v902
      %v977 = vpop.f32.mrf.mxu0
      %v978 = vadd.f32 0.0, %v977
      %v979 = vpop.f32.mrf.mxu0
      %v980 = vadd.f32 0.0, %v979
      %981 = vmatmul.bf16.gmra.mxu0 %v905
      %v982 = vpop.f32.mrf.mxu0
      %v983 = vadd.f32 0.0, %v982
      %v984 = vpop.f32.mrf.mxu0
      %v985 = vadd.f32 0.0, %v984
      %986 = vmatmul.bf16.gmra.mxu0 %v908
      %v987 = vpop.f32.mrf.mxu0
      %v988 = vadd.f32 0.0, %v987
      %v989 = vpop.f32.mrf.mxu0
      %v990 = vadd.f32 0.0, %v989
      %991 = vmatmul.bf16.gmra.mxu0 %v911
      %v992 = vpop.f32.mrf.mxu0
      %v993 = vadd.f32 0.0, %v992
      %v994 = vpop.f32.mrf.mxu0
      %v995 = vadd.f32 0.0, %v994
      %996 = vmatmul.bf16.gmra.mxu0 %v914
      %v997 = vpop.f32.mrf.mxu0
      %v998 = vadd.f32 0.0, %v997
      %v999 = vpop.f32.mrf.mxu0
      %v1000 = vadd.f32 0.0, %v999
      %1001 = vmatmul.bf16.gmra.mxu0 %v917
      %v1002 = vpop.f32.mrf.mxu0
      %v1003 = vadd.f32 0.0, %v1002
      %v1004 = vpop.f32.mrf.mxu0
      %v1005 = vadd.f32 0.0, %v1004
      %1006 = vmatmul.bf16.gmra.mxu0 %v920
      %v1007 = vpop.f32.mrf.mxu0
      %v1008 = vadd.f32 0.0, %v1007
      %v1009 = vpop.f32.mrf.mxu0
      %v1010 = vadd.f32 0.0, %v1009
      %1011 = vmatmul.bf16.gmra.mxu0 %v923
      %v1012 = vpop.f32.mrf.mxu0
      %v1013 = vadd.f32 0.0, %v1012
      %v1014 = vpop.f32.mrf.mxu0
      %v1015 = vadd.f32 0.0, %v1014
      %1016 = vmatmul.bf16.gmra.mxu0 %v926
      %v1017 = vpop.f32.mrf.mxu0
      %v1018 = vadd.f32 0.0, %v1017
      %v1019 = vpop.f32.mrf.mxu0
      %v1020 = vadd.f32 0.0, %v1019
      %1021 = vmatmul.bf16.gmra.mxu0 %v929
      %v1022 = vpop.f32.mrf.mxu0
      %v1023 = vadd.f32 0.0, %v1022
      %v1024 = vpop.f32.mrf.mxu0
      %v1025 = vadd.f32 0.0, %v1024
      %1026 = vmatmul.bf16.gmra.mxu0 %v932
      %v1027 = vpop.f32.mrf.mxu0
      %v1028 = vadd.f32 0.0, %v1027
      %v1029 = vpop.f32.mrf.mxu0
      %v1030 = vadd.f32 0.0, %v1029
      %1031 = vmatmul.bf16.gmra.mxu0 %v935
      %v1032 = vpop.f32.mrf.mxu0
      %v1033 = vadd.f32 0.0, %v1032
      %v1034 = vpop.f32.mrf.mxu0
      %v1035 = vadd.f32 0.0, %v1034
      %1036 = vmatmul.bf16.gmra.mxu0 %v938
      %v1037 = vpop.f32.mrf.mxu0
      %v1038 = vadd.f32 0.0, %v1037
      %v1039 = vpop.f32.mrf.mxu0
      %v1040 = vadd.f32 0.0, %v1039
      %1041 = vdwg.mxu0
      %v1042 = vadd.f32 %v753, %v953
      %v1043 = vadd.f32 %v755, %v955
      %v1044 = vadd.f32 %v758, %v958
      %v1045 = vadd.f32 %v760, %v960
      %v1046 = vadd.f32 %v763, %v963
      %v1047 = vadd.f32 %v765, %v965
      %v1048 = vadd.f32 %v768, %v968
      %v1049 = vadd.f32 %v770, %v970
      %v1050 = vadd.f32 %v773, %v973
      %v1051 = vadd.f32 %v775, %v975
      %v1052 = vadd.f32 %v778, %v978
      %v1053 = vadd.f32 %v780, %v980
      %v1054 = vadd.f32 %v783, %v983
      %v1055 = vadd.f32 %v785, %v985
      %v1056 = vadd.f32 %v788, %v988
      %v1057 = vadd.f32 %v790, %v990
      %v1058 = vadd.f32 %v793, %v993
      %v1059 = vadd.f32 %v795, %v995
      %v1060 = vadd.f32 %v798, %v998
      %v1061 = vadd.f32 %v800, %v1000
      %v1062 = vadd.f32 %v803, %v1003
      %v1063 = vadd.f32 %v805, %v1005
      %v1064 = vadd.f32 %v808, %v1008
      %v1065 = vadd.f32 %v810, %v1010
      %v1066 = vadd.f32 %v813, %v1013
      %v1067 = vadd.f32 %v815, %v1015
      %v1068 = vadd.f32 %v818, %v1018
      %v1069 = vadd.f32 %v820, %v1020
      %v1070 = vadd.f32 %v823, %v1023
      %v1071 = vadd.f32 %v825, %v1025
      %v1072 = vadd.f32 %v828, %v1028
      %v1073 = vadd.f32 %v830, %v1030
      %v1074 = vadd.f32 %v833, %v1033
      %v1075 = vadd.f32 %v835, %v1035
      %v1076 = vadd.f32 %v838, %v1038
      %v1077 = vadd.f32 %v840, %v1040
      %v1078 = vld [vmem:[%s244 + $0x8] sm:$0xe]
      %v1079 = vld [vmem:[%s244 + $0xc] sm:$0xf]
      %v1080 = vld [vmem:[%s244 + $0x10] sm:$0xf]
      %v1081 = vld [vmem:[%s244 + $0x14] sm:$0xf]
      %v1082 = vld [vmem:[%s244 + $0x18] sm:$0xf]
      %v1083 = vld [vmem:[%s244 + $0x1c] sm:$0xf]
      %v1084 = vld [vmem:[%s244 + $0x20] sm:$0xf]
      %v1085 = vld [vmem:[%s244 + $0x24] sm:$0xf]
      %v1086 = vld [vmem:[%s244 + $0x28] sm:$0xf]
      %v1087 = vld [vmem:[%s244 + $0x2c] sm:$0xf]
      %v1088 = vld [vmem:[%s244 + $0x30] sm:$0xf]
      %v1089 = vld [vmem:[%s244 + $0x34] sm:$0xf]
      %v1090 = vld [vmem:[%s244 + $0x38] sm:$0xf]
      %v1091 = vld [vmem:[%s244 + $0x3c] sm:$0xf]
      %v1092 = vld [vmem:[%s244 + $0x40] sm:$0xf]
      %v1093 = vld [vmem:[%s244 + $0x44] sm:$0xf]
      %v1094 = vld [vmem:[%s244 + $0x48] sm:$0xf]
      %v1095 = vld [vmem:[%s244 + $0x4c] sm:$0xf]
      %v1096 = vld [vmem:[%s244 + $0x50] sm:$0xf]
      %v1097 = vld [vmem:[%s244 + $0x54] sm:$0xf]
      %v1098 = vld [vmem:[%s244 + $0x58] sm:$0xf]
      %v1099 = vld [vmem:[%s244 + $0x5c] sm:$0xf]
      %v1100 = vld [vmem:[%s244 + $0x60] sm:$0xf]
      %v1101 = vld [vmem:[%s244 + $0x64] sm:$0xf]
      %v1102 = vld [vmem:[%s244 + $0x68] sm:$0xf]
      %v1103 = vld [vmem:[%s244 + $0x6c] sm:$0xf]
      %v1104 = vld [vmem:[%s244 + $0x70] sm:$0xf]
      %v1105 = vld [vmem:[%s244 + $0x74] sm:$0xf]
      %v1106 = vld [vmem:[%s244 + $0x78] sm:$0xf]
      %v1107 = vld [vmem:[%s244 + $0x7c] sm:$0xf]
      %v1108 = vld [vmem:[%s244 + $0x80] sm:$0xf]
      %v1109 = vld [vmem:[%s244 + $0x84] sm:$0xf]
      %v1110 = vld [vmem:[%s244 + $0x88] sm:$0xf]
      %v1111 = vld [vmem:[%s244 + $0x8c] sm:$0xf]
      %v1112 = vld [vmem:[%s244 + $0x90] sm:$0xf]
      %v1113 = vld [vmem:[%s244 + $0x94] sm:$0xf]
      %v1114 = vld [vmem:[%s244 + $0x98] sm:$0x1]
      %s1115 = scalar_lea.vmem %s248, 12
      %v1116 = vld [vmem:[%s1115] sm:$0xf]
      %v1154 = vunpack.c.l.b16 %v1078
      %v1155 = vunpack.c.l.b16 %v1079
      %v1156 = vunpack.c.l.b16 %v1080
      %v1157 = vunpack.c.l.b16 %v1081
      %v1158 = vunpack.c.l.b16 %v1082
      %v1159 = vunpack.c.l.b16 %v1083
      %v1160 = vunpack.c.l.b16 %v1084
      %v1161 = vunpack.c.l.b16 %v1085
      %v1162 = vunpack.c.l.b16 %v1086
      %v1163 = vunpack.c.l.b16 %v1087
      %v1164 = vunpack.c.l.b16 %v1088
      %v1165 = vunpack.c.l.b16 %v1089
      %v1166 = vunpack.c.l.b16 %v1090
      %v1167 = vunpack.c.l.b16 %v1091
      %v1168 = vunpack.c.l.b16 %v1092
      %v1169 = vunpack.c.l.b16 %v1093
      %v1170 = vunpack.c.l.b16 %v1094
      %v1171 = vunpack.c.l.b16 %v1095
      %v1172 = vunpack.c.l.b16 %v1096
      %v1173 = vunpack.c.l.b16 %v1097
      %v1174 = vunpack.c.l.b16 %v1098
      %v1175 = vunpack.c.l.b16 %v1099
      %v1176 = vunpack.c.l.b16 %v1100
      %v1177 = vunpack.c.l.b16 %v1101
      %v1178 = vunpack.c.l.b16 %v1102
      %v1179 = vunpack.c.l.b16 %v1103
      %v1180 = vunpack.c.l.b16 %v1104
      %v1181 = vunpack.c.l.b16 %v1105
      %v1182 = vunpack.c.l.b16 %v1106
      %v1183 = vunpack.c.l.b16 %v1107
      %v1184 = vunpack.c.l.b16 %v1108
      %v1185 = vunpack.c.l.b16 %v1109
      %v1186 = vunpack.c.l.b16 %v1110
      %v1187 = vunpack.c.l.b16 %v1111
      %v1188 = vunpack.c.l.b16 %v1112
      %v1189 = vunpack.c.l.b16 %v1113
      %v1190 = vunpack.c.l.b16 %v1114
      %v1191 = vpack.c.b16 %v1155, %v1154
      %v1192 = vpack.c.b16 %v1157, %v1156
      %v1193 = vpack.c.b16 %v1159, %v1158
      %v1194 = vpack.c.b16 %v1161, %v1160
      %v1195 = vpack.c.b16 %v1163, %v1162
      %v1196 = vpack.c.b16 %v1165, %v1164
      %v1197 = vpack.c.b16 %v1167, %v1166
      %v1198 = vpack.c.b16 %v1169, %v1168
      %v1199 = vpack.c.b16 %v1171, %v1170
      %v1200 = vpack.c.b16 %v1173, %v1172
      %v1201 = vpack.c.b16 %v1175, %v1174
      %v1202 = vpack.c.b16 %v1177, %v1176
      %v1203 = vpack.c.b16 %v1179, %v1178
      %v1204 = vpack.c.b16 %v1181, %v1180
      %v1205 = vpack.c.b16 %v1183, %v1182
      %v1206 = vpack.c.b16 %v1185, %v1184
      %v1207 = vpack.c.b16 %v1187, %v1186
      %v1208 = vpack.c.b16 %v1189, %v1188
      %v1209 = vpack.c.b16 %v1190, %v1190
      %v1210 = vrot.slane %v1191, 1
      %v1211 = vrot.slane %v1192, 1
      %v1212 = vsel %vm848, %v1210, %v1211
      %v1213 = vrot.slane %v1193, 1
      %v1214 = vsel %vm848, %v1211, %v1213
      %v1215 = vrot.slane %v1194, 1
      %v1216 = vsel %vm848, %v1213, %v1215
      %v1217 = vrot.slane %v1195, 1
      %v1218 = vsel %vm848, %v1215, %v1217
      %v1219 = vrot.slane %v1196, 1
      %v1220 = vsel %vm848, %v1217, %v1219
      %v1221 = vrot.slane %v1197, 1
      %v1222 = vsel %vm848, %v1219, %v1221
      %v1223 = vrot.slane %v1198, 1
      %v1224 = vsel %vm848, %v1221, %v1223
      %v1225 = vrot.slane %v1199, 1
      %v1226 = vsel %vm848, %v1223, %v1225
      %v1227 = vrot.slane %v1200, 1
      %v1228 = vsel %vm848, %v1225, %v1227
      %v1229 = vrot.slane %v1201, 1
      %v1230 = vsel %vm848, %v1227, %v1229
      %v1231 = vrot.slane %v1202, 1
      %v1232 = vsel %vm848, %v1229, %v1231
      %v1233 = vrot.slane %v1203, 1
      %v1234 = vsel %vm848, %v1231, %v1233
      %v1235 = vrot.slane %v1204, 1
      %v1236 = vsel %vm848, %v1233, %v1235
      %v1237 = vrot.slane %v1205, 1
      %v1238 = vsel %vm848, %v1235, %v1237
      %v1239 = vrot.slane %v1206, 1
      %v1240 = vsel %vm848, %v1237, %v1239
      %v1241 = vrot.slane %v1207, 1
      %v1242 = vsel %vm848, %v1239, %v1241
      %v1243 = vrot.slane %v1208, 1
      %v1244 = vsel %vm848, %v1241, %v1243
      %v1245 = vrot.slane %v1209, 1
      %v1246 = vsel %vm848, %v1243, %v1245
      %v1248 = vsel %vm546, %v1212, 0
      %v1251 = vsel %vm546, %v1214, 0
      %v1254 = vsel %vm546, %v1216, 0
      %v1257 = vsel %vm546, %v1218, 0
      %v1260 = vsel %vm546, %v1220, 0
      %v1263 = vsel %vm546, %v1222, 0
      %v1266 = vsel %vm546, %v1224, 0
      %v1269 = vsel %vm546, %v1226, 0
      %v1272 = vsel %vm546, %v1228, 0
      %v1275 = vsel %vm546, %v1230, 0
      %v1278 = vsel %vm546, %v1232, 0
      %v1281 = vsel %vm546, %v1234, 0
      %v1284 = vsel %vm546, %v1236, 0
      %v1287 = vsel %vm546, %v1238, 0
      %v1290 = vsel %vm546, %v1240, 0
      %v1293 = vsel %vm546, %v1242, 0
      %v1296 = vsel %vm546, %v1244, 0
      %v1299 = vsel %vm546, %v1246, 0
      %v1302 = vsel %vm601, %v1116, 0
      %1304 = vmatpush.bf16.msra.mxu0 0
      %1305 = vmatpush.bf16.msra.mxu0 0
      %1306 = vmatpush.bf16.msra.mxu0 0
      %1307 = vmatpush.bf16.msra.mxu0 0
      %1308 = vmatpush.bf16.msra.mxu0 0
      %1309 = vmatpush.bf16.msra.mxu0 0
      %1310 = vmatpush.bf16.msra.mxu0 0
      %1311 = vmatpush.bf16.msra.mxu0 %v1302
      %1312 = vmatmul.bf16.gmra.mxu0 %v1248
      %v1313 = vpop.f32.mrf.mxu0
      %v1314 = vadd.f32 0.0, %v1313
      %v1315 = vpop.f32.mrf.mxu0
      %v1316 = vadd.f32 0.0, %v1315
      %1317 = vmatmul.bf16.gmra.mxu0 %v1251
      %v1318 = vpop.f32.mrf.mxu0
      %v1319 = vadd.f32 0.0, %v1318
      %v1320 = vpop.f32.mrf.mxu0
      %v1321 = vadd.f32 0.0, %v1320
      %1322 = vmatmul.bf16.gmra.mxu0 %v1254
      %v1323 = vpop.f32.mrf.mxu0
      %v1324 = vadd.f32 0.0, %v1323
      %v1325 = vpop.f32.mrf.mxu0
      %v1326 = vadd.f32 0.0, %v1325
      %1327 = vmatmul.bf16.gmra.mxu0 %v1257
      %v1328 = vpop.f32.mrf.mxu0
      %v1329 = vadd.f32 0.0, %v1328
      %v1330 = vpop.f32.mrf.mxu0
      %v1331 = vadd.f32 0.0, %v1330
      %1332 = vmatmul.bf16.gmra.mxu0 %v1260
      %v1333 = vpop.f32.mrf.mxu0
      %v1334 = vadd.f32 0.0, %v1333
      %v1335 = vpop.f32.mrf.mxu0
      %v1336 = vadd.f32 0.0, %v1335
      %1337 = vmatmul.bf16.gmra.mxu0 %v1263
      %v1338 = vpop.f32.mrf.mxu0
      %v1339 = vadd.f32 0.0, %v1338
      %v1340 = vpop.f32.mrf.mxu0
      %v1341 = vadd.f32 0.0, %v1340
      %1342 = vmatmul.bf16.gmra.mxu0 %v1266
      %v1343 = vpop.f32.mrf.mxu0
      %v1344 = vadd.f32 0.0, %v1343
      %v1345 = vpop.f32.mrf.mxu0
      %v1346 = vadd.f32 0.0, %v1345
      %1347 = vmatmul.bf16.gmra.mxu0 %v1269
      %v1348 = vpop.f32.mrf.mxu0
      %v1349 = vadd.f32 0.0, %v1348
      %v1350 = vpop.f32.mrf.mxu0
      %v1351 = vadd.f32 0.0, %v1350
      %1352 = vmatmul.bf16.gmra.mxu0 %v1272
      %v1353 = vpop.f32.mrf.mxu0
      %v1354 = vadd.f32 0.0, %v1353
      %v1355 = vpop.f32.mrf.mxu0
      %v1356 = vadd.f32 0.0, %v1355
      %1357 = vmatmul.bf16.gmra.mxu0 %v1275
      %v1358 = vpop.f32.mrf.mxu0
      %v1359 = vadd.f32 0.0, %v1358
      %v1360 = vpop.f32.mrf.mxu0
      %v1361 = vadd.f32 0.0, %v1360
      %1362 = vmatmul.bf16.gmra.mxu0 %v1278
      %v1363 = vpop.f32.mrf.mxu0
      %v1364 = vadd.f32 0.0, %v1363
      %v1365 = vpop.f32.mrf.mxu0
      %v1366 = vadd.f32 0.0, %v1365
      %1367 = vmatmul.bf16.gmra.mxu0 %v1281
      %v1368 = vpop.f32.mrf.mxu0
      %v1369 = vadd.f32 0.0, %v1368
      %v1370 = vpop.f32.mrf.mxu0
      %v1371 = vadd.f32 0.0, %v1370
      %1372 = vmatmul.bf16.gmra.mxu0 %v1284
      %v1373 = vpop.f32.mrf.mxu0
      %v1374 = vadd.f32 0.0, %v1373
      %v1375 = vpop.f32.mrf.mxu0
      %v1376 = vadd.f32 0.0, %v1375
      %1377 = vmatmul.bf16.gmra.mxu0 %v1287
      %v1378 = vpop.f32.mrf.mxu0
      %v1379 = vadd.f32 0.0, %v1378
      %v1380 = vpop.f32.mrf.mxu0
      %v1381 = vadd.f32 0.0, %v1380
      %1382 = vmatmul.bf16.gmra.mxu0 %v1290
      %v1383 = vpop.f32.mrf.mxu0
      %v1384 = vadd.f32 0.0, %v1383
      %v1385 = vpop.f32.mrf.mxu0
      %v1386 = vadd.f32 0.0, %v1385
      %1387 = vmatmul.bf16.gmra.mxu0 %v1293
      %v1388 = vpop.f32.mrf.mxu0
      %v1389 = vadd.f32 0.0, %v1388
      %v1390 = vpop.f32.mrf.mxu0
      %v1391 = vadd.f32 0.0, %v1390
      %1392 = vmatmul.bf16.gmra.mxu0 %v1296
      %v1393 = vpop.f32.mrf.mxu0
      %v1394 = vadd.f32 0.0, %v1393
      %v1395 = vpop.f32.mrf.mxu0
      %v1396 = vadd.f32 0.0, %v1395
      %1397 = vmatmul.bf16.gmra.mxu0 %v1299
      %v1398 = vpop.f32.mrf.mxu0
      %v1399 = vadd.f32 0.0, %v1398
      %v1400 = vpop.f32.mrf.mxu0
      %v1401 = vadd.f32 0.0, %v1400
      %1402 = vdwg.mxu0
      %v1403 = vadd.f32 %v1042, %v1314
      %v1404 = vadd.f32 %v1043, %v1316
      %v1405 = vadd.f32 %v1044, %v1319
      %v1406 = vadd.f32 %v1045, %v1321
      %v1407 = vadd.f32 %v1046, %v1324
      %v1408 = vadd.f32 %v1047, %v1326
      %v1409 = vadd.f32 %v1048, %v1329
      %v1410 = vadd.f32 %v1049, %v1331
      %v1411 = vadd.f32 %v1050, %v1334
      %v1412 = vadd.f32 %v1051, %v1336
      %v1413 = vadd.f32 %v1052, %v1339
      %v1414 = vadd.f32 %v1053, %v1341
      %v1415 = vadd.f32 %v1054, %v1344
      %v1416 = vadd.f32 %v1055, %v1346
      %v1417 = vadd.f32 %v1056, %v1349
      %v1418 = vadd.f32 %v1057, %v1351
      %v1419 = vadd.f32 %v1058, %v1354
      %v1420 = vadd.f32 %v1059, %v1356
      %v1421 = vadd.f32 %v1060, %v1359
      %v1422 = vadd.f32 %v1061, %v1361
      %v1423 = vadd.f32 %v1062, %v1364
      %v1424 = vadd.f32 %v1063, %v1366
      %v1425 = vadd.f32 %v1064, %v1369
      %v1426 = vadd.f32 %v1065, %v1371
      %v1427 = vadd.f32 %v1066, %v1374
      %v1428 = vadd.f32 %v1067, %v1376
      %v1429 = vadd.f32 %v1068, %v1379
      %v1430 = vadd.f32 %v1069, %v1381
      %v1431 = vadd.f32 %v1070, %v1384
      %v1432 = vadd.f32 %v1071, %v1386
      %v1433 = vadd.f32 %v1072, %v1389
      %v1434 = vadd.f32 %v1073, %v1391
      %v1435 = vadd.f32 %v1074, %v1394
      %v1436 = vadd.f32 %v1075, %v1396
      %v1437 = vadd.f32 %v1076, %v1399
      %v1438 = vadd.f32 %v1077, %v1401
      %v1439 = vld [vmem:[%s244 + $0x98] sm:$0x3]
      %s1440 = scalar_lea.vmem %s248, 16
      %v1441 = vld [vmem:[%s1440] sm:$0xf]
      %v1443 = vunpack.c.l.b16 %v1439
      %v1444 = vpack.c.b16 %v1443, %v1443
      %vm1445 = vsmask.f32 6400
      %v1447 = vshrl.u32 %v1191, 16
      %v1449 = vrot.slane %v1447, 1
      %v1450 = vshll.u32 %v1191, 16
      %v1452 = vrot.slane %v1450, 2
      %v1453 = vor.u32 %v1449, %v1452
      %v1455 = vshrl.u32 %v1192, 16
      %v1457 = vrot.slane %v1455, 1
      %v1458 = vshll.u32 %v1192, 16
      %v1460 = vrot.slane %v1458, 2
      %v1461 = vor.u32 %v1457, %v1460
      %v1462 = vsel %vm1445, %v1453, %v1461
      %v1464 = vshrl.u32 %v1193, 16
      %v1466 = vrot.slane %v1464, 1
      %v1467 = vshll.u32 %v1193, 16
      %v1469 = vrot.slane %v1467, 2
      %v1470 = vor.u32 %v1466, %v1469
      %v1471 = vsel %vm1445, %v1461, %v1470
      %v1473 = vshrl.u32 %v1194, 16
      %v1475 = vrot.slane %v1473, 1
      %v1476 = vshll.u32 %v1194, 16
      %v1478 = vrot.slane %v1476, 2
      %v1479 = vor.u32 %v1475, %v1478
      %v1480 = vsel %vm1445, %v1470, %v1479
      %v1482 = vshrl.u32 %v1195, 16
      %v1484 = vrot.slane %v1482, 1
      %v1485 = vshll.u32 %v1195, 16
      %v1487 = vrot.slane %v1485, 2
      %v1488 = vor.u32 %v1484, %v1487
      %v1489 = vsel %vm1445, %v1479, %v1488
      %v1491 = vshrl.u32 %v1196, 16
      %v1493 = vrot.slane %v1491, 1
      %v1494 = vshll.u32 %v1196, 16
      %v1496 = vrot.slane %v1494, 2
      %v1497 = vor.u32 %v1493, %v1496
      %v1498 = vsel %vm1445, %v1488, %v1497
      %v1500 = vshrl.u32 %v1197, 16
      %v1502 = vrot.slane %v1500, 1
      %v1503 = vshll.u32 %v1197, 16
      %v1505 = vrot.slane %v1503, 2
      %v1506 = vor.u32 %v1502, %v1505
      %v1507 = vsel %vm1445, %v1497, %v1506
      %v1509 = vshrl.u32 %v1198, 16
      %v1511 = vrot.slane %v1509, 1
      %v1512 = vshll.u32 %v1198, 16
      %v1514 = vrot.slane %v1512, 2
      %v1515 = vor.u32 %v1511, %v1514
      %v1516 = vsel %vm1445, %v1506, %v1515
      %v1518 = vshrl.u32 %v1199, 16
      %v1520 = vrot.slane %v1518, 1
      %v1521 = vshll.u32 %v1199, 16
      %v1523 = vrot.slane %v1521, 2
      %v1524 = vor.u32 %v1520, %v1523
      %v1525 = vsel %vm1445, %v1515, %v1524
      %v1527 = vshrl.u32 %v1200, 16
      %v1529 = vrot.slane %v1527, 1
      %v1530 = vshll.u32 %v1200, 16
      %v1532 = vrot.slane %v1530, 2
      %v1533 = vor.u32 %v1529, %v1532
      %v1534 = vsel %vm1445, %v1524, %v1533
      %v1536 = vshrl.u32 %v1201, 16
      %v1538 = vrot.slane %v1536, 1
      %v1539 = vshll.u32 %v1201, 16
      %v1541 = vrot.slane %v1539, 2
      %v1542 = vor.u32 %v1538, %v1541
      %v1543 = vsel %vm1445, %v1533, %v1542
      %v1545 = vshrl.u32 %v1202, 16
      %v1547 = vrot.slane %v1545, 1
      %v1548 = vshll.u32 %v1202, 16
      %v1550 = vrot.slane %v1548, 2
      %v1551 = vor.u32 %v1547, %v1550
      %v1552 = vsel %vm1445, %v1542, %v1551
      %v1554 = vshrl.u32 %v1203, 16
      %v1556 = vrot.slane %v1554, 1
      %v1557 = vshll.u32 %v1203, 16
      %v1559 = vrot.slane %v1557, 2
      %v1560 = vor.u32 %v1556, %v1559
      %v1561 = vsel %vm1445, %v1551, %v1560
      %v1563 = vshrl.u32 %v1204, 16
      %v1565 = vrot.slane %v1563, 1
      %v1566 = vshll.u32 %v1204, 16
      %v1568 = vrot.slane %v1566, 2
      %v1569 = vor.u32 %v1565, %v1568
      %v1570 = vsel %vm1445, %v1560, %v1569
      %v1572 = vshrl.u32 %v1205, 16
      %v1574 = vrot.slane %v1572, 1
      %v1575 = vshll.u32 %v1205, 16
      %v1577 = vrot.slane %v1575, 2
      %v1578 = vor.u32 %v1574, %v1577
      %v1579 = vsel %vm1445, %v1569, %v1578
      %v1581 = vshrl.u32 %v1206, 16
      %v1583 = vrot.slane %v1581, 1
      %v1584 = vshll.u32 %v1206, 16
      %v1586 = vrot.slane %v1584, 2
      %v1587 = vor.u32 %v1583, %v1586
      %v1588 = vsel %vm1445, %v1578, %v1587
      %v1590 = vshrl.u32 %v1207, 16
      %v1592 = vrot.slane %v1590, 1
      %v1593 = vshll.u32 %v1207, 16
      %v1595 = vrot.slane %v1593, 2
      %v1596 = vor.u32 %v1592, %v1595
      %v1597 = vsel %vm1445, %v1587, %v1596
      %v1599 = vshrl.u32 %v1208, 16
      %v1601 = vrot.slane %v1599, 1
      %v1602 = vshll.u32 %v1208, 16
      %v1604 = vrot.slane %v1602, 2
      %v1605 = vor.u32 %v1601, %v1604
      %v1606 = vsel %vm1445, %v1596, %v1605
      %v1608 = vshrl.u32 %v1444, 16
      %v1610 = vrot.slane %v1608, 1
      %v1611 = vshll.u32 %v1444, 16
      %v1613 = vrot.slane %v1611, 2
      %v1614 = vor.u32 %v1610, %v1613
      %v1615 = vsel %vm1445, %v1605, %v1614
      %v1617 = vsel %vm546, %v1462, 0
      %v1620 = vsel %vm546, %v1471, 0
      %v1623 = vsel %vm546, %v1480, 0
      %v1626 = vsel %vm546, %v1489, 0
      %v1629 = vsel %vm546, %v1498, 0
      %v1632 = vsel %vm546, %v1507, 0
      %v1635 = vsel %vm546, %v1516, 0
      %v1638 = vsel %vm546, %v1525, 0
      %v1641 = vsel %vm546, %v1534, 0
      %v1644 = vsel %vm546, %v1543, 0
      %v1647 = vsel %vm546, %v1552, 0
      %v1650 = vsel %vm546, %v1561, 0
      %v1653 = vsel %vm546, %v1570, 0
      %v1656 = vsel %vm546, %v1579, 0
      %v1659 = vsel %vm546, %v1588, 0
      %v1662 = vsel %vm546, %v1597, 0
      %v1665 = vsel %vm546, %v1606, 0
      %v1668 = vsel %vm546, %v1615, 0
      %v1671 = vsel %vm601, %v1441, 0
      %1673 = vmatpush.bf16.msra.mxu0 0
      %1674 = vmatpush.bf16.msra.mxu0 0
      %1675 = vmatpush.bf16.msra.mxu0 0
      %1676 = vmatpush.bf16.msra.mxu0 0
      %1677 = vmatpush.bf16.msra.mxu0 0
      %1678 = vmatpush.bf16.msra.mxu0 0
      %1679 = vmatpush.bf16.msra.mxu0 0
      %1680 = vmatpush.bf16.msra.mxu0 %v1671
      %1681 = vmatmul.bf16.gmra.mxu0 %v1617
      %v1682 = vpop.f32.mrf.mxu0
      %v1683 = vadd.f32 0.0, %v1682
      %v1684 = vpop.f32.mrf.mxu0
      %v1685 = vadd.f32 0.0, %v1684
      %1686 = vmatmul.bf16.gmra.mxu0 %v1620
      %v1687 = vpop.f32.mrf.mxu0
      %v1688 = vadd.f32 0.0, %v1687
      %v1689 = vpop.f32.mrf.mxu0
      %v1690 = vadd.f32 0.0, %v1689
      %1691 = vmatmul.bf16.gmra.mxu0 %v1623
      %v1692 = vpop.f32.mrf.mxu0
      %v1693 = vadd.f32 0.0, %v1692
      %v1694 = vpop.f32.mrf.mxu0
      %v1695 = vadd.f32 0.0, %v1694
      %1696 = vmatmul.bf16.gmra.mxu0 %v1626
      %v1697 = vpop.f32.mrf.mxu0
      %v1698 = vadd.f32 0.0, %v1697
      %v1699 = vpop.f32.mrf.mxu0
      %v1700 = vadd.f32 0.0, %v1699
      %1701 = vmatmul.bf16.gmra.mxu0 %v1629
      %v1702 = vpop.f32.mrf.mxu0
      %v1703 = vadd.f32 0.0, %v1702
      %v1704 = vpop.f32.mrf.mxu0
      %v1705 = vadd.f32 0.0, %v1704
      %1706 = vmatmul.bf16.gmra.mxu0 %v1632
      %v1707 = vpop.f32.mrf.mxu0
      %v1708 = vadd.f32 0.0, %v1707
      %v1709 = vpop.f32.mrf.mxu0
      %v1710 = vadd.f32 0.0, %v1709
      %1711 = vmatmul.bf16.gmra.mxu0 %v1635
      %v1712 = vpop.f32.mrf.mxu0
      %v1713 = vadd.f32 0.0, %v1712
      %v1714 = vpop.f32.mrf.mxu0
      %v1715 = vadd.f32 0.0, %v1714
      %1716 = vmatmul.bf16.gmra.mxu0 %v1638
      %v1717 = vpop.f32.mrf.mxu0
      %v1718 = vadd.f32 0.0, %v1717
      %v1719 = vpop.f32.mrf.mxu0
      %v1720 = vadd.f32 0.0, %v1719
      %1721 = vmatmul.bf16.gmra.mxu0 %v1641
      %v1722 = vpop.f32.mrf.mxu0
      %v1723 = vadd.f32 0.0, %v1722
      %v1724 = vpop.f32.mrf.mxu0
      %v1725 = vadd.f32 0.0, %v1724
      %1726 = vmatmul.bf16.gmra.mxu0 %v1644
      %v1727 = vpop.f32.mrf.mxu0
      %v1728 = vadd.f32 0.0, %v1727
      %v1729 = vpop.f32.mrf.mxu0
      %v1730 = vadd.f32 0.0, %v1729
      %1731 = vmatmul.bf16.gmra.mxu0 %v1647
      %v1732 = vpop.f32.mrf.mxu0
      %v1733 = vadd.f32 0.0, %v1732
      %v1734 = vpop.f32.mrf.mxu0
      %v1735 = vadd.f32 0.0, %v1734
      %1736 = vmatmul.bf16.gmra.mxu0 %v1650
      %v1737 = vpop.f32.mrf.mxu0
      %v1738 = vadd.f32 0.0, %v1737
      %v1739 = vpop.f32.mrf.mxu0
      %v1740 = vadd.f32 0.0, %v1739
      %1741 = vmatmul.bf16.gmra.mxu0 %v1653
      %v1742 = vpop.f32.mrf.mxu0
      %v1743 = vadd.f32 0.0, %v1742
      %v1744 = vpop.f32.mrf.mxu0
      %v1745 = vadd.f32 0.0, %v1744
      %1746 = vmatmul.bf16.gmra.mxu0 %v1656
      %v1747 = vpop.f32.mrf.mxu0
      %v1748 = vadd.f32 0.0, %v1747
      %v1749 = vpop.f32.mrf.mxu0
      %v1750 = vadd.f32 0.0, %v1749
      %1751 = vmatmul.bf16.gmra.mxu0 %v1659
      %v1752 = vpop.f32.mrf.mxu0
      %v1753 = vadd.f32 0.0, %v1752
      %v1754 = vpop.f32.mrf.mxu0
      %v1755 = vadd.f32 0.0, %v1754
      %1756 = vmatmul.bf16.gmra.mxu0 %v1662
      %v1757 = vpop.f32.mrf.mxu0
      %v1758 = vadd.f32 0.0, %v1757
      %v1759 = vpop.f32.mrf.mxu0
      %v1760 = vadd.f32 0.0, %v1759
      %1761 = vmatmul.bf16.gmra.mxu0 %v1665
      %v1762 = vpop.f32.mrf.mxu0
      %v1763 = vadd.f32 0.0, %v1762
      %v1764 = vpop.f32.mrf.mxu0
      %v1765 = vadd.f32 0.0, %v1764
      %1766 = vmatmul.bf16.gmra.mxu0 %v1668
      %v1767 = vpop.f32.mrf.mxu0
      %v1768 = vadd.f32 0.0, %v1767
      %v1769 = vpop.f32.mrf.mxu0
      %v1770 = vadd.f32 0.0, %v1769
      %1771 = vdwg.mxu0
      %v1772 = vadd.f32 %v1403, %v1683
      %v1773 = vadd.f32 %v1404, %v1685
      %v1774 = vadd.f32 %v1405, %v1688
      %v1775 = vadd.f32 %v1406, %v1690
      %v1776 = vadd.f32 %v1407, %v1693
      %v1777 = vadd.f32 %v1408, %v1695
      %v1778 = vadd.f32 %v1409, %v1698
      %v1779 = vadd.f32 %v1410, %v1700
      %v1780 = vadd.f32 %v1411, %v1703
      %v1781 = vadd.f32 %v1412, %v1705
      %v1782 = vadd.f32 %v1413, %v1708
      %v1783 = vadd.f32 %v1414, %v1710
      %v1784 = vadd.f32 %v1415, %v1713
      %v1785 = vadd.f32 %v1416, %v1715
      %v1786 = vadd.f32 %v1417, %v1718
      %v1787 = vadd.f32 %v1418, %v1720
      %v1788 = vadd.f32 %v1419, %v1723
      %v1789 = vadd.f32 %v1420, %v1725
      %v1790 = vadd.f32 %v1421, %v1728
      %v1791 = vadd.f32 %v1422, %v1730
      %v1792 = vadd.f32 %v1423, %v1733
      %v1793 = vadd.f32 %v1424, %v1735
      %v1794 = vadd.f32 %v1425, %v1738
      %v1795 = vadd.f32 %v1426, %v1740
      %v1796 = vadd.f32 %v1427, %v1743
      %v1797 = vadd.f32 %v1428, %v1745
      %v1798 = vadd.f32 %v1429, %v1748
      %v1799 = vadd.f32 %v1430, %v1750
      %v1800 = vadd.f32 %v1431, %v1753
      %v1801 = vadd.f32 %v1432, %v1755
      %v1802 = vadd.f32 %v1433, %v1758
      %v1803 = vadd.f32 %v1434, %v1760
      %v1804 = vadd.f32 %v1435, %v1763
      %v1805 = vadd.f32 %v1436, %v1765
      %v1806 = vadd.f32 %v1437, %v1768
      %v1807 = vadd.f32 %v1438, %v1770
      %v1808 = vld [vmem:[%s244 + $0x8] sm:$0xc]
      %s1809 = scalar_lea.vmem %s248, 20
      %v1810 = vld [vmem:[%s1809] sm:$0xf]
      %v1812 = vunpack.c.l.b16 %v1808
      %v1813 = vpack.c.b16 %v1155, %v1812
      %vm1814 = vcmask 1045504
      %v1815 = vrot.slane %v1813, 2
      %v1816 = vrot.slane %v1192, 2
      %v1817 = vsel %vm1814, %v1815, %v1816
      %v1818 = vrot.slane %v1193, 2
      %v1819 = vsel %vm1814, %v1816, %v1818
      %v1820 = vrot.slane %v1194, 2
      %v1821 = vsel %vm1814, %v1818, %v1820
      %v1822 = vrot.slane %v1195, 2
      %v1823 = vsel %vm1814, %v1820, %v1822
      %v1824 = vrot.slane %v1196, 2
      %v1825 = vsel %vm1814, %v1822, %v1824
      %v1826 = vrot.slane %v1197, 2
      %v1827 = vsel %vm1814, %v1824, %v1826
      %v1828 = vrot.slane %v1198, 2
      %v1829 = vsel %vm1814, %v1826, %v1828
      %v1830 = vrot.slane %v1199, 2
      %v1831 = vsel %vm1814, %v1828, %v1830
      %v1832 = vrot.slane %v1200, 2
      %v1833 = vsel %vm1814, %v1830, %v1832
      %v1834 = vrot.slane %v1201, 2
      %v1835 = vsel %vm1814, %v1832, %v1834
      %v1836 = vrot.slane %v1202, 2
      %v1837 = vsel %vm1814, %v1834, %v1836
      %v1838 = vrot.slane %v1203, 2
      %v1839 = vsel %vm1814, %v1836, %v1838
      %v1840 = vrot.slane %v1204, 2
      %v1841 = vsel %vm1814, %v1838, %v1840
      %v1842 = vrot.slane %v1205, 2
      %v1843 = vsel %vm1814, %v1840, %v1842
      %v1844 = vrot.slane %v1206, 2
      %v1845 = vsel %vm1814, %v1842, %v1844
      %v1846 = vrot.slane %v1207, 2
      %v1847 = vsel %vm1814, %v1844, %v1846
      %v1848 = vrot.slane %v1208, 2
      %v1849 = vsel %vm1814, %v1846, %v1848
      %v1850 = vrot.slane %v1444, 2
      %v1851 = vsel %vm1814, %v1848, %v1850
      %v1853 = vsel %vm546, %v1817, 0
      %v1856 = vsel %vm546, %v1819, 0
      %v1859 = vsel %vm546, %v1821, 0
      %v1862 = vsel %vm546, %v1823, 0
      %v1865 = vsel %vm546, %v1825, 0
      %v1868 = vsel %vm546, %v1827, 0
      %v1871 = vsel %vm546, %v1829, 0
      %v1874 = vsel %vm546, %v1831, 0
      %v1877 = vsel %vm546, %v1833, 0
      %v1880 = vsel %vm546, %v1835, 0
      %v1883 = vsel %vm546, %v1837, 0
      %v1886 = vsel %vm546, %v1839, 0
      %v1889 = vsel %vm546, %v1841, 0
      %v1892 = vsel %vm546, %v1843, 0
      %v1895 = vsel %vm546, %v1845, 0
      %v1898 = vsel %vm546, %v1847, 0
      %v1901 = vsel %vm546, %v1849, 0
      %v1904 = vsel %vm546, %v1851, 0
      %v1907 = vsel %vm601, %v1810, 0
      %1909 = vmatpush.bf16.msra.mxu0 0
      %1910 = vmatpush.bf16.msra.mxu0 0
      %1911 = vmatpush.bf16.msra.mxu0 0
      %1912 = vmatpush.bf16.msra.mxu0 0
      %1913 = vmatpush.bf16.msra.mxu0 0
      %1914 = vmatpush.bf16.msra.mxu0 0
      %1915 = vmatpush.bf16.msra.mxu0 0
      %1916 = vmatpush.bf16.msra.mxu0 %v1907
      %1917 = vmatmul.bf16.gmra.mxu0 %v1853
      %v1918 = vpop.f32.mrf.mxu0
      %v1919 = vadd.f32 0.0, %v1918
      %v1920 = vpop.f32.mrf.mxu0
      %v1921 = vadd.f32 0.0, %v1920
      %1922 = vmatmul.bf16.gmra.mxu0 %v1856
      %v1923 = vpop.f32.mrf.mxu0
      %v1924 = vadd.f32 0.0, %v1923
      %v1925 = vpop.f32.mrf.mxu0
      %v1926 = vadd.f32 0.0, %v1925
      %1927 = vmatmul.bf16.gmra.mxu0 %v1859
      %v1928 = vpop.f32.mrf.mxu0
      %v1929 = vadd.f32 0.0, %v1928
      %v1930 = vpop.f32.mrf.mxu0
      %v1931 = vadd.f32 0.0, %v1930
      %1932 = vmatmul.bf16.gmra.mxu0 %v1862
      %v1933 = vpop.f32.mrf.mxu0
      %v1934 = vadd.f32 0.0, %v1933
      %v1935 = vpop.f32.mrf.mxu0
      %v1936 = vadd.f32 0.0, %v1935
      %1937 = vmatmul.bf16.gmra.mxu0 %v1865
      %v1938 = vpop.f32.mrf.mxu0
      %v1939 = vadd.f32 0.0, %v1938
      %v1940 = vpop.f32.mrf.mxu0
      %v1941 = vadd.f32 0.0, %v1940
      %1942 = vmatmul.bf16.gmra.mxu0 %v1868
      %v1943 = vpop.f32.mrf.mxu0
      %v1944 = vadd.f32 0.0, %v1943
      %v1945 = vpop.f32.mrf.mxu0
      %v1946 = vadd.f32 0.0, %v1945
      %1947 = vmatmul.bf16.gmra.mxu0 %v1871
      %v1948 = vpop.f32.mrf.mxu0
      %v1949 = vadd.f32 0.0, %v1948
      %v1950 = vpop.f32.mrf.mxu0
      %v1951 = vadd.f32 0.0, %v1950
      %1952 = vmatmul.bf16.gmra.mxu0 %v1874
      %v1953 = vpop.f32.mrf.mxu0
      %v1954 = vadd.f32 0.0, %v1953
      %v1955 = vpop.f32.mrf.mxu0
      %v1956 = vadd.f32 0.0, %v1955
      %1957 = vmatmul.bf16.gmra.mxu0 %v1877
      %v1958 = vpop.f32.mrf.mxu0
      %v1959 = vadd.f32 0.0, %v1958
      %v1960 = vpop.f32.mrf.mxu0
      %v1961 = vadd.f32 0.0, %v1960
      %1962 = vmatmul.bf16.gmra.mxu0 %v1880
      %v1963 = vpop.f32.mrf.mxu0
      %v1964 = vadd.f32 0.0, %v1963
      %v1965 = vpop.f32.mrf.mxu0
      %v1966 = vadd.f32 0.0, %v1965
      %1967 = vmatmul.bf16.gmra.mxu0 %v1883
      %v1968 = vpop.f32.mrf.mxu0
      %v1969 = vadd.f32 0.0, %v1968
      %v1970 = vpop.f32.mrf.mxu0
      %v1971 = vadd.f32 0.0, %v1970
      %1972 = vmatmul.bf16.gmra.mxu0 %v1886
      %v1973 = vpop.f32.mrf.mxu0
      %v1974 = vadd.f32 0.0, %v1973
      %v1975 = vpop.f32.mrf.mxu0
      %v1976 = vadd.f32 0.0, %v1975
      %1977 = vmatmul.bf16.gmra.mxu0 %v1889
      %v1978 = vpop.f32.mrf.mxu0
      %v1979 = vadd.f32 0.0, %v1978
      %v1980 = vpop.f32.mrf.mxu0
      %v1981 = vadd.f32 0.0, %v1980
      %1982 = vmatmul.bf16.gmra.mxu0 %v1892
      %v1983 = vpop.f32.mrf.mxu0
      %v1984 = vadd.f32 0.0, %v1983
      %v1985 = vpop.f32.mrf.mxu0
      %v1986 = vadd.f32 0.0, %v1985
      %1987 = vmatmul.bf16.gmra.mxu0 %v1895
      %v1988 = vpop.f32.mrf.mxu0
      %v1989 = vadd.f32 0.0, %v1988
      %v1990 = vpop.f32.mrf.mxu0
      %v1991 = vadd.f32 0.0, %v1990
      %1992 = vmatmul.bf16.gmra.mxu0 %v1898
      %v1993 = vpop.f32.mrf.mxu0
      %v1994 = vadd.f32 0.0, %v1993
      %v1995 = vpop.f32.mrf.mxu0
      %v1996 = vadd.f32 0.0, %v1995
      %1997 = vmatmul.bf16.gmra.mxu0 %v1901
      %v1998 = vpop.f32.mrf.mxu0
      %v1999 = vadd.f32 0.0, %v1998
      %v2000 = vpop.f32.mrf.mxu0
      %v2001 = vadd.f32 0.0, %v2000
      %2002 = vmatmul.bf16.gmra.mxu0 %v1904
      %v2003 = vpop.f32.mrf.mxu0
      %v2004 = vadd.f32 0.0, %v2003
      %v2005 = vpop.f32.mrf.mxu0
      %v2006 = vadd.f32 0.0, %v2005
      %2007 = vdwg.mxu0
      %v2008 = vadd.f32 %v1772, %v1919
      %v2009 = vadd.f32 %v1773, %v1921
      %v2010 = vadd.f32 %v1774, %v1924
      %v2011 = vadd.f32 %v1775, %v1926
      %v2012 = vadd.f32 %v1776, %v1929
      %v2013 = vadd.f32 %v1777, %v1931
      %v2014 = vadd.f32 %v1778, %v1934
      %v2015 = vadd.f32 %v1779, %v1936
      %v2016 = vadd.f32 %v1780, %v1939
      %v2017 = vadd.f32 %v1781, %v1941
      %v2018 = vadd.f32 %v1782, %v1944
      %v2019 = vadd.f32 %v1783, %v1946
      %v2020 = vadd.f32 %v1784, %v1949
      %v2021 = vadd.f32 %v1785, %v1951
      %v2022 = vadd.f32 %v1786, %v1954
      %v2023 = vadd.f32 %v1787, %v1956
      %v2024 = vadd.f32 %v1788, %v1959
      %v2025 = vadd.f32 %v1789, %v1961
      %v2026 = vadd.f32 %v1790, %v1964
      %v2027 = vadd.f32 %v1791, %v1966
      %v2028 = vadd.f32 %v1792, %v1969
      %v2029 = vadd.f32 %v1793, %v1971
      %v2030 = vadd.f32 %v1794, %v1974
      %v2031 = vadd.f32 %v1795, %v1976
      %v2032 = vadd.f32 %v1796, %v1979
      %v2033 = vadd.f32 %v1797, %v1981
      %v2034 = vadd.f32 %v1798, %v1984
      %v2035 = vadd.f32 %v1799, %v1986
      %v2036 = vadd.f32 %v1800, %v1989
      %v2037 = vadd.f32 %v1801, %v1991
      %v2038 = vadd.f32 %v1802, %v1994
      %v2039 = vadd.f32 %v1803, %v1996
      %v2040 = vadd.f32 %v1804, %v1999
      %v2041 = vadd.f32 %v1805, %v2001
      %v2042 = vadd.f32 %v1806, %v2004
      %v2043 = vadd.f32 %v1807, %v2006
      %v2044 = vld [vmem:[%s244 + $0x10] sm:$0xc]
      %v2045 = vld [vmem:[%s244 + $0x14] sm:$0xf]
      %v2046 = vld [vmem:[%s244 + $0x18] sm:$0xf]
      %v2047 = vld [vmem:[%s244 + $0x1c] sm:$0xf]
      %v2048 = vld [vmem:[%s244 + $0x20] sm:$0xf]
      %v2049 = vld [vmem:[%s244 + $0x24] sm:$0xf]
      %v2050 = vld [vmem:[%s244 + $0x28] sm:$0xf]
      %v2051 = vld [vmem:[%s244 + $0x2c] sm:$0xf]
      %v2052 = vld [vmem:[%s244 + $0x30] sm:$0xf]
      %v2053 = vld [vmem:[%s244 + $0x34] sm:$0xf]
      %v2054 = vld [vmem:[%s244 + $0x38] sm:$0xf]
      %v2055 = vld [vmem:[%s244 + $0x3c] sm:$0xf]
      %v2056 = vld [vmem:[%s244 + $0x40] sm:$0xf]
      %v2057 = vld [vmem:[%s244 + $0x44] sm:$0xf]
      %v2058 = vld [vmem:[%s244 + $0x48] sm:$0xf]
      %v2059 = vld [vmem:[%s244 + $0x4c] sm:$0xf]
      %v2060 = vld [vmem:[%s244 + $0x50] sm:$0xf]
      %v2061 = vld [vmem:[%s244 + $0x54] sm:$0xf]
      %v2062 = vld [vmem:[%s244 + $0x58] sm:$0xf]
      %v2063 = vld [vmem:[%s244 + $0x5c] sm:$0xf]
      %v2064 = vld [vmem:[%s244 + $0x60] sm:$0xf]
      %v2065 = vld [vmem:[%s244 + $0x64] sm:$0xf]
      %v2066 = vld [vmem:[%s244 + $0x68] sm:$0xf]
      %v2067 = vld [vmem:[%s244 + $0x6c] sm:$0xf]
      %v2068 = vld [vmem:[%s244 + $0x70] sm:$0xf]
      %v2069 = vld [vmem:[%s244 + $0x74] sm:$0xf]
      %v2070 = vld [vmem:[%s244 + $0x78] sm:$0xf]
      %v2071 = vld [vmem:[%s244 + $0x7c] sm:$0xf]
      %v2072 = vld [vmem:[%s244 + $0x80] sm:$0xf]
      %v2073 = vld [vmem:[%s244 + $0x84] sm:$0xf]
      %v2074 = vld [vmem:[%s244 + $0x88] sm:$0xf]
      %v2075 = vld [vmem:[%s244 + $0x8c] sm:$0xf]
      %v2076 = vld [vmem:[%s244 + $0x90] sm:$0xf]
      %v2077 = vld [vmem:[%s244 + $0x94] sm:$0xf]
      %v2078 = vld [vmem:[%s244 + $0x98] sm:$0xf]
      %v2079 = vld [vmem:[%s244 + $0x9c] sm:$0xf]
      %v2080 = vld [vmem:[%s244 + $0xa0] sm:$0x3]
      %s2081 = scalar_lea.vmem %s248, 24
      %v2082 = vld [vmem:[%s2081] sm:$0xf]
      %v2120 = vunpack.c.l.b16 %v2044
      %v2121 = vunpack.c.l.b16 %v2045
      %v2122 = vunpack.c.l.b16 %v2046
      %v2123 = vunpack.c.l.b16 %v2047
      %v2124 = vunpack.c.l.b16 %v2048
      %v2125 = vunpack.c.l.b16 %v2049
      %v2126 = vunpack.c.l.b16 %v2050
      %v2127 = vunpack.c.l.b16 %v2051
      %v2128 = vunpack.c.l.b16 %v2052
      %v2129 = vunpack.c.l.b16 %v2053
      %v2130 = vunpack.c.l.b16 %v2054
      %v2131 = vunpack.c.l.b16 %v2055
      %v2132 = vunpack.c.l.b16 %v2056
      %v2133 = vunpack.c.l.b16 %v2057
      %v2134 = vunpack.c.l.b16 %v2058
      %v2135 = vunpack.c.l.b16 %v2059
      %v2136 = vunpack.c.l.b16 %v2060
      %v2137 = vunpack.c.l.b16 %v2061
      %v2138 = vunpack.c.l.b16 %v2062
      %v2139 = vunpack.c.l.b16 %v2063
      %v2140 = vunpack.c.l.b16 %v2064
      %v2141 = vunpack.c.l.b16 %v2065
      %v2142 = vunpack.c.l.b16 %v2066
      %v2143 = vunpack.c.l.b16 %v2067
      %v2144 = vunpack.c.l.b16 %v2068
      %v2145 = vunpack.c.l.b16 %v2069
      %v2146 = vunpack.c.l.b16 %v2070
      %v2147 = vunpack.c.l.b16 %v2071
      %v2148 = vunpack.c.l.b16 %v2072
      %v2149 = vunpack.c.l.b16 %v2073
      %v2150 = vunpack.c.l.b16 %v2074
      %v2151 = vunpack.c.l.b16 %v2075
      %v2152 = vunpack.c.l.b16 %v2076
      %v2153 = vunpack.c.l.b16 %v2077
      %v2154 = vunpack.c.l.b16 %v2078
      %v2155 = vunpack.c.l.b16 %v2079
      %v2156 = vunpack.c.l.b16 %v2080
      %v2157 = vpack.c.b16 %v2121, %v2120
      %v2158 = vpack.c.b16 %v2123, %v2122
      %v2159 = vpack.c.b16 %v2125, %v2124
      %v2160 = vpack.c.b16 %v2127, %v2126
      %v2161 = vpack.c.b16 %v2129, %v2128
      %v2162 = vpack.c.b16 %v2131, %v2130
      %v2163 = vpack.c.b16 %v2133, %v2132
      %v2164 = vpack.c.b16 %v2135, %v2134
      %v2165 = vpack.c.b16 %v2137, %v2136
      %v2166 = vpack.c.b16 %v2139, %v2138
      %v2167 = vpack.c.b16 %v2141, %v2140
      %v2168 = vpack.c.b16 %v2143, %v2142
      %v2169 = vpack.c.b16 %v2145, %v2144
      %v2170 = vpack.c.b16 %v2147, %v2146
      %v2171 = vpack.c.b16 %v2149, %v2148
      %v2172 = vpack.c.b16 %v2151, %v2150
      %v2173 = vpack.c.b16 %v2153, %v2152
      %v2174 = vpack.c.b16 %v2155, %v2154
      %v2175 = vpack.c.b16 %v2156, %v2156
      %v2176 = vrot.slane %v2157, 2
      %v2177 = vrot.slane %v2158, 2
      %v2178 = vsel %vm1814, %v2176, %v2177
      %v2179 = vrot.slane %v2159, 2
      %v2180 = vsel %vm1814, %v2177, %v2179
      %v2181 = vrot.slane %v2160, 2
      %v2182 = vsel %vm1814, %v2179, %v2181
      %v2183 = vrot.slane %v2161, 2
      %v2184 = vsel %vm1814, %v2181, %v2183
      %v2185 = vrot.slane %v2162, 2
      %v2186 = vsel %vm1814, %v2183, %v2185
      %v2187 = vrot.slane %v2163, 2
      %v2188 = vsel %vm1814, %v2185, %v2187
      %v2189 = vrot.slane %v2164, 2
      %v2190 = vsel %vm1814, %v2187, %v2189
      %v2191 = vrot.slane %v2165, 2
      %v2192 = vsel %vm1814, %v2189, %v2191
      %v2193 = vrot.slane %v2166, 2
      %v2194 = vsel %vm1814, %v2191, %v2193
      %v2195 = vrot.slane %v2167, 2
      %v2196 = vsel %vm1814, %v2193, %v2195
      %v2197 = vrot.slane %v2168, 2
      %v2198 = vsel %vm1814, %v2195, %v2197
      %v2199 = vrot.slane %v2169, 2
      %v2200 = vsel %vm1814, %v2197, %v2199
      %v2201 = vrot.slane %v2170, 2
      %v2202 = vsel %vm1814, %v2199, %v2201
      %v2203 = vrot.slane %v2171, 2
      %v2204 = vsel %vm1814, %v2201, %v2203
      %v2205 = vrot.slane %v2172, 2
      %v2206 = vsel %vm1814, %v2203, %v2205
      %v2207 = vrot.slane %v2173, 2
      %v2208 = vsel %vm1814, %v2205, %v2207
      %v2209 = vrot.slane %v2174, 2
      %v2210 = vsel %vm1814, %v2207, %v2209
      %v2211 = vrot.slane %v2175, 2
      %v2212 = vsel %vm1814, %v2209, %v2211
      %v2214 = vsel %vm546, %v2178, 0
      %v2217 = vsel %vm546, %v2180, 0
      %v2220 = vsel %vm546, %v2182, 0
      %v2223 = vsel %vm546, %v2184, 0
      %v2226 = vsel %vm546, %v2186, 0
      %v2229 = vsel %vm546, %v2188, 0
      %v2232 = vsel %vm546, %v2190, 0
      %v2235 = vsel %vm546, %v2192, 0
      %v2238 = vsel %vm546, %v2194, 0
      %v2241 = vsel %vm546, %v2196, 0
      %v2244 = vsel %vm546, %v2198, 0
      %v2247 = vsel %vm546, %v2200, 0
      %v2250 = vsel %vm546, %v2202, 0
      %v2253 = vsel %vm546, %v2204, 0
      %v2256 = vsel %vm546, %v2206, 0
      %v2259 = vsel %vm546, %v2208, 0
      %v2262 = vsel %vm546, %v2210, 0
      %v2265 = vsel %vm546, %v2212, 0
      %v2268 = vsel %vm601, %v2082, 0
      %2270 = vmatpush.bf16.msra.mxu0 0
      %2271 = vmatpush.bf16.msra.mxu0 0
      %2272 = vmatpush.bf16.msra.mxu0 0
      %2273 = vmatpush.bf16.msra.mxu0 0
      %2274 = vmatpush.bf16.msra.mxu0 0
      %2275 = vmatpush.bf16.msra.mxu0 0
      %2276 = vmatpush.bf16.msra.mxu0 0
      %2277 = vmatpush.bf16.msra.mxu0 %v2268
      %2278 = vmatmul.bf16.gmra.mxu0 %v2214
      %v2279 = vpop.f32.mrf.mxu0
      %v2280 = vadd.f32 0.0, %v2279
      %v2281 = vpop.f32.mrf.mxu0
      %v2282 = vadd.f32 0.0, %v2281
      %2283 = vmatmul.bf16.gmra.mxu0 %v2217
      %v2284 = vpop.f32.mrf.mxu0
      %v2285 = vadd.f32 0.0, %v2284
      %v2286 = vpop.f32.mrf.mxu0
      %v2287 = vadd.f32 0.0, %v2286
      %2288 = vmatmul.bf16.gmra.mxu0 %v2220
      %v2289 = vpop.f32.mrf.mxu0
      %v2290 = vadd.f32 0.0, %v2289
      %v2291 = vpop.f32.mrf.mxu0
      %v2292 = vadd.f32 0.0, %v2291
      %2293 = vmatmul.bf16.gmra.mxu0 %v2223
      %v2294 = vpop.f32.mrf.mxu0
      %v2295 = vadd.f32 0.0, %v2294
      %v2296 = vpop.f32.mrf.mxu0
      %v2297 = vadd.f32 0.0, %v2296
      %2298 = vmatmul.bf16.gmra.mxu0 %v2226
      %v2299 = vpop.f32.mrf.mxu0
      %v2300 = vadd.f32 0.0, %v2299
      %v2301 = vpop.f32.mrf.mxu0
      %v2302 = vadd.f32 0.0, %v2301
      %2303 = vmatmul.bf16.gmra.mxu0 %v2229
      %v2304 = vpop.f32.mrf.mxu0
      %v2305 = vadd.f32 0.0, %v2304
      %v2306 = vpop.f32.mrf.mxu0
      %v2307 = vadd.f32 0.0, %v2306
      %2308 = vmatmul.bf16.gmra.mxu0 %v2232
      %v2309 = vpop.f32.mrf.mxu0
      %v2310 = vadd.f32 0.0, %v2309
      %v2311 = vpop.f32.mrf.mxu0
      %v2312 = vadd.f32 0.0, %v2311
      %2313 = vmatmul.bf16.gmra.mxu0 %v2235
      %v2314 = vpop.f32.mrf.mxu0
      %v2315 = vadd.f32 0.0, %v2314
      %v2316 = vpop.f32.mrf.mxu0
      %v2317 = vadd.f32 0.0, %v2316
      %2318 = vmatmul.bf16.gmra.mxu0 %v2238
      %v2319 = vpop.f32.mrf.mxu0
      %v2320 = vadd.f32 0.0, %v2319
      %v2321 = vpop.f32.mrf.mxu0
      %v2322 = vadd.f32 0.0, %v2321
      %2323 = vmatmul.bf16.gmra.mxu0 %v2241
      %v2324 = vpop.f32.mrf.mxu0
      %v2325 = vadd.f32 0.0, %v2324
      %v2326 = vpop.f32.mrf.mxu0
      %v2327 = vadd.f32 0.0, %v2326
      %2328 = vmatmul.bf16.gmra.mxu0 %v2244
      %v2329 = vpop.f32.mrf.mxu0
      %v2330 = vadd.f32 0.0, %v2329
      %v2331 = vpop.f32.mrf.mxu0
      %v2332 = vadd.f32 0.0, %v2331
      %2333 = vmatmul.bf16.gmra.mxu0 %v2247
      %v2334 = vpop.f32.mrf.mxu0
      %v2335 = vadd.f32 0.0, %v2334
      %v2336 = vpop.f32.mrf.mxu0
      %v2337 = vadd.f32 0.0, %v2336
      %2338 = vmatmul.bf16.gmra.mxu0 %v2250
      %v2339 = vpop.f32.mrf.mxu0
      %v2340 = vadd.f32 0.0, %v2339
      %v2341 = vpop.f32.mrf.mxu0
      %v2342 = vadd.f32 0.0, %v2341
      %2343 = vmatmul.bf16.gmra.mxu0 %v2253
      %v2344 = vpop.f32.mrf.mxu0
      %v2345 = vadd.f32 0.0, %v2344
      %v2346 = vpop.f32.mrf.mxu0
      %v2347 = vadd.f32 0.0, %v2346
      %2348 = vmatmul.bf16.gmra.mxu0 %v2256
      %v2349 = vpop.f32.mrf.mxu0
      %v2350 = vadd.f32 0.0, %v2349
      %v2351 = vpop.f32.mrf.mxu0
      %v2352 = vadd.f32 0.0, %v2351
      %2353 = vmatmul.bf16.gmra.mxu0 %v2259
      %v2354 = vpop.f32.mrf.mxu0
      %v2355 = vadd.f32 0.0, %v2354
      %v2356 = vpop.f32.mrf.mxu0
      %v2357 = vadd.f32 0.0, %v2356
      %2358 = vmatmul.bf16.gmra.mxu0 %v2262
      %v2359 = vpop.f32.mrf.mxu0
      %v2360 = vadd.f32 0.0, %v2359
      %v2361 = vpop.f32.mrf.mxu0
      %v2362 = vadd.f32 0.0, %v2361
      %2363 = vmatmul.bf16.gmra.mxu0 %v2265
      %v2364 = vpop.f32.mrf.mxu0
      %v2365 = vadd.f32 0.0, %v2364
      %v2366 = vpop.f32.mrf.mxu0
      %v2367 = vadd.f32 0.0, %v2366
      %2368 = vdwg.mxu0
      %v2369 = vadd.f32 %v2008, %v2280
      %v2370 = vadd.f32 %v2009, %v2282
      %v2371 = vadd.f32 %v2010, %v2285
      %v2372 = vadd.f32 %v2011, %v2287
      %v2373 = vadd.f32 %v2012, %v2290
      %v2374 = vadd.f32 %v2013, %v2292
      %v2375 = vadd.f32 %v2014, %v2295
      %v2376 = vadd.f32 %v2015, %v2297
      %v2377 = vadd.f32 %v2016, %v2300
      %v2378 = vadd.f32 %v2017, %v2302
      %v2379 = vadd.f32 %v2018, %v2305
      %v2380 = vadd.f32 %v2019, %v2307
      %v2381 = vadd.f32 %v2020, %v2310
      %v2382 = vadd.f32 %v2021, %v2312
      %v2383 = vadd.f32 %v2022, %v2315
      %v2384 = vadd.f32 %v2023, %v2317
      %v2385 = vadd.f32 %v2024, %v2320
      %v2386 = vadd.f32 %v2025, %v2322
      %v2387 = vadd.f32 %v2026, %v2325
      %v2388 = vadd.f32 %v2027, %v2327
      %v2389 = vadd.f32 %v2028, %v2330
      %v2390 = vadd.f32 %v2029, %v2332
      %v2391 = vadd.f32 %v2030, %v2335
      %v2392 = vadd.f32 %v2031, %v2337
      %v2393 = vadd.f32 %v2032, %v2340
      %v2394 = vadd.f32 %v2033, %v2342
      %v2395 = vadd.f32 %v2034, %v2345
      %v2396 = vadd.f32 %v2035, %v2347
      %v2397 = vadd.f32 %v2036, %v2350
      %v2398 = vadd.f32 %v2037, %v2352
      %v2399 = vadd.f32 %v2038, %v2355
      %v2400 = vadd.f32 %v2039, %v2357
      %v2401 = vadd.f32 %v2040, %v2360
      %v2402 = vadd.f32 %v2041, %v2362
      %v2403 = vadd.f32 %v2042, %v2365
      %v2404 = vadd.f32 %v2043, %v2367
      %v2405 = vld [vmem:[%s244 + $0xa0] sm:$0x7]
      %s2406 = scalar_lea.vmem %s248, 28
      %v2407 = vld [vmem:[%s2406] sm:$0xf]
      %v2409 = vunpack.c.l.b16 %v2405
      %v2410 = vpack.c.b16 %v2409, %v2409
      %vm2411 = vsmask.f32 5376
      %v2413 = vshrl.u32 %v2157, 16
      %v2415 = vrot.slane %v2413, 2
      %v2416 = vshll.u32 %v2157, 16
      %v2418 = vrot.slane %v2416, 3
      %v2419 = vor.u32 %v2415, %v2418
      %v2421 = vshrl.u32 %v2158, 16
      %v2423 = vrot.slane %v2421, 2
      %v2424 = vshll.u32 %v2158, 16
      %v2426 = vrot.slane %v2424, 3
      %v2427 = vor.u32 %v2423, %v2426
      %v2428 = vsel %vm2411, %v2419, %v2427
      %v2430 = vshrl.u32 %v2159, 16
      %v2432 = vrot.slane %v2430, 2
      %v2433 = vshll.u32 %v2159, 16
      %v2435 = vrot.slane %v2433, 3
      %v2436 = vor.u32 %v2432, %v2435
      %v2437 = vsel %vm2411, %v2427, %v2436
      %v2439 = vshrl.u32 %v2160, 16
      %v2441 = vrot.slane %v2439, 2
      %v2442 = vshll.u32 %v2160, 16
      %v2444 = vrot.slane %v2442, 3
      %v2445 = vor.u32 %v2441, %v2444
      %v2446 = vsel %vm2411, %v2436, %v2445
      %v2448 = vshrl.u32 %v2161, 16
      %v2450 = vrot.slane %v2448, 2
      %v2451 = vshll.u32 %v2161, 16
      %v2453 = vrot.slane %v2451, 3
      %v2454 = vor.u32 %v2450, %v2453
      %v2455 = vsel %vm2411, %v2445, %v2454
      %v2457 = vshrl.u32 %v2162, 16
      %v2459 = vrot.slane %v2457, 2
      %v2460 = vshll.u32 %v2162, 16
      %v2462 = vrot.slane %v2460, 3
      %v2463 = vor.u32 %v2459, %v2462
      %v2464 = vsel %vm2411, %v2454, %v2463
      %v2466 = vshrl.u32 %v2163, 16
      %v2468 = vrot.slane %v2466, 2
      %v2469 = vshll.u32 %v2163, 16
      %v2471 = vrot.slane %v2469, 3
      %v2472 = vor.u32 %v2468, %v2471
      %v2473 = vsel %vm2411, %v2463, %v2472
      %v2475 = vshrl.u32 %v2164, 16
      %v2477 = vrot.slane %v2475, 2
      %v2478 = vshll.u32 %v2164, 16
      %v2480 = vrot.slane %v2478, 3
      %v2481 = vor.u32 %v2477, %v2480
      %v2482 = vsel %vm2411, %v2472, %v2481
      %v2484 = vshrl.u32 %v2165, 16
      %v2486 = vrot.slane %v2484, 2
      %v2487 = vshll.u32 %v2165, 16
      %v2489 = vrot.slane %v2487, 3
      %v2490 = vor.u32 %v2486, %v2489
      %v2491 = vsel %vm2411, %v2481, %v2490
      %v2493 = vshrl.u32 %v2166, 16
      %v2495 = vrot.slane %v2493, 2
      %v2496 = vshll.u32 %v2166, 16
      %v2498 = vrot.slane %v2496, 3
      %v2499 = vor.u32 %v2495, %v2498
      %v2500 = vsel %vm2411, %v2490, %v2499
      %v2502 = vshrl.u32 %v2167, 16
      %v2504 = vrot.slane %v2502, 2
      %v2505 = vshll.u32 %v2167, 16
      %v2507 = vrot.slane %v2505, 3
      %v2508 = vor.u32 %v2504, %v2507
      %v2509 = vsel %vm2411, %v2499, %v2508
      %v2511 = vshrl.u32 %v2168, 16
      %v2513 = vrot.slane %v2511, 2
      %v2514 = vshll.u32 %v2168, 16
      %v2516 = vrot.slane %v2514, 3
      %v2517 = vor.u32 %v2513, %v2516
      %v2518 = vsel %vm2411, %v2508, %v2517
      %v2520 = vshrl.u32 %v2169, 16
      %v2522 = vrot.slane %v2520, 2
      %v2523 = vshll.u32 %v2169, 16
      %v2525 = vrot.slane %v2523, 3
      %v2526 = vor.u32 %v2522, %v2525
      %v2527 = vsel %vm2411, %v2517, %v2526
      %v2529 = vshrl.u32 %v2170, 16
      %v2531 = vrot.slane %v2529, 2
      %v2532 = vshll.u32 %v2170, 16
      %v2534 = vrot.slane %v2532, 3
      %v2535 = vor.u32 %v2531, %v2534
      %v2536 = vsel %vm2411, %v2526, %v2535
      %v2538 = vshrl.u32 %v2171, 16
      %v2540 = vrot.slane %v2538, 2
      %v2541 = vshll.u32 %v2171, 16
      %v2543 = vrot.slane %v2541, 3
      %v2544 = vor.u32 %v2540, %v2543
      %v2545 = vsel %vm2411, %v2535, %v2544
      %v2547 = vshrl.u32 %v2172, 16
      %v2549 = vrot.slane %v2547, 2
      %v2550 = vshll.u32 %v2172, 16
      %v2552 = vrot.slane %v2550, 3
      %v2553 = vor.u32 %v2549, %v2552
      %v2554 = vsel %vm2411, %v2544, %v2553
      %v2556 = vshrl.u32 %v2173, 16
      %v2558 = vrot.slane %v2556, 2
      %v2559 = vshll.u32 %v2173, 16
      %v2561 = vrot.slane %v2559, 3
      %v2562 = vor.u32 %v2558, %v2561
      %v2563 = vsel %vm2411, %v2553, %v2562
      %v2565 = vshrl.u32 %v2174, 16
      %v2567 = vrot.slane %v2565, 2
      %v2568 = vshll.u32 %v2174, 16
      %v2570 = vrot.slane %v2568, 3
      %v2571 = vor.u32 %v2567, %v2570
      %v2572 = vsel %vm2411, %v2562, %v2571
      %v2574 = vshrl.u32 %v2410, 16
      %v2576 = vrot.slane %v2574, 2
      %v2577 = vshll.u32 %v2410, 16
      %v2579 = vrot.slane %v2577, 3
      %v2580 = vor.u32 %v2576, %v2579
      %v2581 = vsel %vm2411, %v2571, %v2580
      %v2583 = vsel %vm546, %v2428, 0
      %v2586 = vsel %vm546, %v2437, 0
      %v2589 = vsel %vm546, %v2446, 0
      %v2592 = vsel %vm546, %v2455, 0
      %v2595 = vsel %vm546, %v2464, 0
      %v2598 = vsel %vm546, %v2473, 0
      %v2601 = vsel %vm546, %v2482, 0
      %v2604 = vsel %vm546, %v2491, 0
      %v2607 = vsel %vm546, %v2500, 0
      %v2610 = vsel %vm546, %v2509, 0
      %v2613 = vsel %vm546, %v2518, 0
      %v2616 = vsel %vm546, %v2527, 0
      %v2619 = vsel %vm546, %v2536, 0
      %v2622 = vsel %vm546, %v2545, 0
      %v2625 = vsel %vm546, %v2554, 0
      %v2628 = vsel %vm546, %v2563, 0
      %v2631 = vsel %vm546, %v2572, 0
      %v2634 = vsel %vm546, %v2581, 0
      %v2637 = vsel %vm601, %v2407, 0
      %2639 = vmatpush.bf16.msra.mxu0 0
      %2640 = vmatpush.bf16.msra.mxu0 0
      %2641 = vmatpush.bf16.msra.mxu0 0
      %2642 = vmatpush.bf16.msra.mxu0 0
      %2643 = vmatpush.bf16.msra.mxu0 0
      %2644 = vmatpush.bf16.msra.mxu0 0
      %2645 = vmatpush.bf16.msra.mxu0 0
      %2646 = vmatpush.bf16.msra.mxu0 %v2637
      %2647 = vmatmul.bf16.gmra.mxu0 %v2583
      %v2648 = vpop.f32.mrf.mxu0
      %v2649 = vadd.f32 0.0, %v2648
      %v2650 = vpop.f32.mrf.mxu0
      %v2651 = vadd.f32 0.0, %v2650
      %2652 = vmatmul.bf16.gmra.mxu0 %v2586
      %v2653 = vpop.f32.mrf.mxu0
      %v2654 = vadd.f32 0.0, %v2653
      %v2655 = vpop.f32.mrf.mxu0
      %v2656 = vadd.f32 0.0, %v2655
      %2657 = vmatmul.bf16.gmra.mxu0 %v2589
      %v2658 = vpop.f32.mrf.mxu0
      %v2659 = vadd.f32 0.0, %v2658
      %v2660 = vpop.f32.mrf.mxu0
      %v2661 = vadd.f32 0.0, %v2660
      %2662 = vmatmul.bf16.gmra.mxu0 %v2592
      %v2663 = vpop.f32.mrf.mxu0
      %v2664 = vadd.f32 0.0, %v2663
      %v2665 = vpop.f32.mrf.mxu0
      %v2666 = vadd.f32 0.0, %v2665
      %2667 = vmatmul.bf16.gmra.mxu0 %v2595
      %v2668 = vpop.f32.mrf.mxu0
      %v2669 = vadd.f32 0.0, %v2668
      %v2670 = vpop.f32.mrf.mxu0
      %v2671 = vadd.f32 0.0, %v2670
      %2672 = vmatmul.bf16.gmra.mxu0 %v2598
      %v2673 = vpop.f32.mrf.mxu0
      %v2674 = vadd.f32 0.0, %v2673
      %v2675 = vpop.f32.mrf.mxu0
      %v2676 = vadd.f32 0.0, %v2675
      %2677 = vmatmul.bf16.gmra.mxu0 %v2601
      %v2678 = vpop.f32.mrf.mxu0
      %v2679 = vadd.f32 0.0, %v2678
      %v2680 = vpop.f32.mrf.mxu0
      %v2681 = vadd.f32 0.0, %v2680
      %2682 = vmatmul.bf16.gmra.mxu0 %v2604
      %v2683 = vpop.f32.mrf.mxu0
      %v2684 = vadd.f32 0.0, %v2683
      %v2685 = vpop.f32.mrf.mxu0
      %v2686 = vadd.f32 0.0, %v2685
      %2687 = vmatmul.bf16.gmra.mxu0 %v2607
      %v2688 = vpop.f32.mrf.mxu0
      %v2689 = vadd.f32 0.0, %v2688
      %v2690 = vpop.f32.mrf.mxu0
      %v2691 = vadd.f32 0.0, %v2690
      %2692 = vmatmul.bf16.gmra.mxu0 %v2610
      %v2693 = vpop.f32.mrf.mxu0
      %v2694 = vadd.f32 0.0, %v2693
      %v2695 = vpop.f32.mrf.mxu0
      %v2696 = vadd.f32 0.0, %v2695
      %2697 = vmatmul.bf16.gmra.mxu0 %v2613
      %v2698 = vpop.f32.mrf.mxu0
      %v2699 = vadd.f32 0.0, %v2698
      %v2700 = vpop.f32.mrf.mxu0
      %v2701 = vadd.f32 0.0, %v2700
      %2702 = vmatmul.bf16.gmra.mxu0 %v2616
      %v2703 = vpop.f32.mrf.mxu0
      %v2704 = vadd.f32 0.0, %v2703
      %v2705 = vpop.f32.mrf.mxu0
      %v2706 = vadd.f32 0.0, %v2705
      %2707 = vmatmul.bf16.gmra.mxu0 %v2619
      %v2708 = vpop.f32.mrf.mxu0
      %v2709 = vadd.f32 0.0, %v2708
      %v2710 = vpop.f32.mrf.mxu0
      %v2711 = vadd.f32 0.0, %v2710
      %2712 = vmatmul.bf16.gmra.mxu0 %v2622
      %v2713 = vpop.f32.mrf.mxu0
      %v2714 = vadd.f32 0.0, %v2713
      %v2715 = vpop.f32.mrf.mxu0
      %v2716 = vadd.f32 0.0, %v2715
      %2717 = vmatmul.bf16.gmra.mxu0 %v2625
      %v2718 = vpop.f32.mrf.mxu0
      %v2719 = vadd.f32 0.0, %v2718
      %v2720 = vpop.f32.mrf.mxu0
      %v2721 = vadd.f32 0.0, %v2720
      %2722 = vmatmul.bf16.gmra.mxu0 %v2628
      %v2723 = vpop.f32.mrf.mxu0
      %v2724 = vadd.f32 0.0, %v2723
      %v2725 = vpop.f32.mrf.mxu0
      %v2726 = vadd.f32 0.0, %v2725
      %2727 = vmatmul.bf16.gmra.mxu0 %v2631
      %v2728 = vpop.f32.mrf.mxu0
      %v2729 = vadd.f32 0.0, %v2728
      %v2730 = vpop.f32.mrf.mxu0
      %v2731 = vadd.f32 0.0, %v2730
      %2732 = vmatmul.bf16.gmra.mxu0 %v2634
      %v2733 = vpop.f32.mrf.mxu0
      %v2734 = vadd.f32 0.0, %v2733
      %v2735 = vpop.f32.mrf.mxu0
      %v2736 = vadd.f32 0.0, %v2735
      %2737 = vdwg.mxu0
      %v2738 = vadd.f32 %v2369, %v2649
      %v2739 = vadd.f32 %v2370, %v2651
      %v2740 = vadd.f32 %v2371, %v2654
      %v2741 = vadd.f32 %v2372, %v2656
      %v2742 = vadd.f32 %v2373, %v2659
      %v2743 = vadd.f32 %v2374, %v2661
      %v2744 = vadd.f32 %v2375, %v2664
      %v2745 = vadd.f32 %v2376, %v2666
      %v2746 = vadd.f32 %v2377, %v2669
      %v2747 = vadd.f32 %v2378, %v2671
      %v2748 = vadd.f32 %v2379, %v2674
      %v2749 = vadd.f32 %v2380, %v2676
      %v2750 = vadd.f32 %v2381, %v2679
      %v2751 = vadd.f32 %v2382, %v2681
      %v2752 = vadd.f32 %v2383, %v2684
      %v2753 = vadd.f32 %v2384, %v2686
      %v2754 = vadd.f32 %v2385, %v2689
      %v2755 = vadd.f32 %v2386, %v2691
      %v2756 = vadd.f32 %v2387, %v2694
      %v2757 = vadd.f32 %v2388, %v2696
      %v2758 = vadd.f32 %v2389, %v2699
      %v2759 = vadd.f32 %v2390, %v2701
      %v2760 = vadd.f32 %v2391, %v2704
      %v2761 = vadd.f32 %v2392, %v2706
      %v2762 = vadd.f32 %v2393, %v2709
      %v2763 = vadd.f32 %v2394, %v2711
      %v2764 = vadd.f32 %v2395, %v2714
      %v2765 = vadd.f32 %v2396, %v2716
      %v2766 = vadd.f32 %v2397, %v2719
      %v2767 = vadd.f32 %v2398, %v2721
      %v2768 = vadd.f32 %v2399, %v2724
      %v2769 = vadd.f32 %v2400, %v2726
      %v2770 = vadd.f32 %v2401, %v2729
      %v2771 = vadd.f32 %v2402, %v2731
      %v2772 = vadd.f32 %v2403, %v2734
      %v2773 = vadd.f32 %v2404, %v2736
      %v2774 = vld [vmem:[%s244 + $0x10] sm:$0x8]
      %s2775 = scalar_lea.vmem %s248, 32
      %v2776 = vld [vmem:[%s2775] sm:$0xf]
      %v2778 = vunpack.c.l.b16 %v2774
      %v2779 = vpack.c.b16 %v2121, %v2778
      %vm2780 = vcmask 1044480
      %v2781 = vrot.slane %v2779, 3
      %v2782 = vrot.slane %v2158, 3
      %v2783 = vsel %vm2780, %v2781, %v2782
      %v2784 = vrot.slane %v2159, 3
      %v2785 = vsel %vm2780, %v2782, %v2784
      %v2786 = vrot.slane %v2160, 3
      %v2787 = vsel %vm2780, %v2784, %v2786
      %v2788 = vrot.slane %v2161, 3
      %v2789 = vsel %vm2780, %v2786, %v2788
      %v2790 = vrot.slane %v2162, 3
      %v2791 = vsel %vm2780, %v2788, %v2790
      %v2792 = vrot.slane %v2163, 3
      %v2793 = vsel %vm2780, %v2790, %v2792
      %v2794 = vrot.slane %v2164, 3
      %v2795 = vsel %vm2780, %v2792, %v2794
      %v2796 = vrot.slane %v2165, 3
      %v2797 = vsel %vm2780, %v2794, %v2796
      %v2798 = vrot.slane %v2166, 3
      %v2799 = vsel %vm2780, %v2796, %v2798
      %v2800 = vrot.slane %v2167, 3
      %v2801 = vsel %vm2780, %v2798, %v2800
      %v2802 = vrot.slane %v2168, 3
      %v2803 = vsel %vm2780, %v2800, %v2802
      %v2804 = vrot.slane %v2169, 3
      %v2805 = vsel %vm2780, %v2802, %v2804
      %v2806 = vrot.slane %v2170, 3
      %v2807 = vsel %vm2780, %v2804, %v2806
      %v2808 = vrot.slane %v2171, 3
      %v2809 = vsel %vm2780, %v2806, %v2808
      %v2810 = vrot.slane %v2172, 3
      %v2811 = vsel %vm2780, %v2808, %v2810
      %v2812 = vrot.slane %v2173, 3
      %v2813 = vsel %vm2780, %v2810, %v2812
      %v2814 = vrot.slane %v2174, 3
      %v2815 = vsel %vm2780, %v2812, %v2814
      %v2816 = vrot.slane %v2410, 3
      %v2817 = vsel %vm2780, %v2814, %v2816
      %v2819 = vsel %vm546, %v2783, 0
      %v2822 = vsel %vm546, %v2785, 0
      %v2825 = vsel %vm546, %v2787, 0
      %v2828 = vsel %vm546, %v2789, 0
      %v2831 = vsel %vm546, %v2791, 0
      %v2834 = vsel %vm546, %v2793, 0
      %v2837 = vsel %vm546, %v2795, 0
      %v2840 = vsel %vm546, %v2797, 0
      %v2843 = vsel %vm546, %v2799, 0
      %v2846 = vsel %vm546, %v2801, 0
      %v2849 = vsel %vm546, %v2803, 0
      %v2852 = vsel %vm546, %v2805, 0
      %v2855 = vsel %vm546, %v2807, 0
      %v2858 = vsel %vm546, %v2809, 0
      %v2861 = vsel %vm546, %v2811, 0
      %v2864 = vsel %vm546, %v2813, 0
      %v2867 = vsel %vm546, %v2815, 0
      %v2870 = vsel %vm546, %v2817, 0
      %v2873 = vsel %vm601, %v2776, 0
      %2875 = vmatpush.bf16.msra.mxu0 0
      %2876 = vmatpush.bf16.msra.mxu0 0
      %2877 = vmatpush.bf16.msra.mxu0 0
      %2878 = vmatpush.bf16.msra.mxu0 0
      %2879 = vmatpush.bf16.msra.mxu0 0
      %2880 = vmatpush.bf16.msra.mxu0 0
      %2881 = vmatpush.bf16.msra.mxu0 0
      %2882 = vmatpush.bf16.msra.mxu0 %v2873
      %2883 = vmatmul.bf16.gmra.mxu0 %v2819
      %v2884 = vpop.f32.mrf.mxu0
      %v2885 = vadd.f32 0.0, %v2884
      %v2886 = vpop.f32.mrf.mxu0
      %v2887 = vadd.f32 0.0, %v2886
      %2888 = vmatmul.bf16.gmra.mxu0 %v2822
      %v2889 = vpop.f32.mrf.mxu0
      %v2890 = vadd.f32 0.0, %v2889
      %v2891 = vpop.f32.mrf.mxu0
      %v2892 = vadd.f32 0.0, %v2891
      %2893 = vmatmul.bf16.gmra.mxu0 %v2825
      %v2894 = vpop.f32.mrf.mxu0
      %v2895 = vadd.f32 0.0, %v2894
      %v2896 = vpop.f32.mrf.mxu0
      %v2897 = vadd.f32 0.0, %v2896
      %2898 = vmatmul.bf16.gmra.mxu0 %v2828
      %v2899 = vpop.f32.mrf.mxu0
      %v2900 = vadd.f32 0.0, %v2899
      %v2901 = vpop.f32.mrf.mxu0
      %v2902 = vadd.f32 0.0, %v2901
      %2903 = vmatmul.bf16.gmra.mxu0 %v2831
      %v2904 = vpop.f32.mrf.mxu0
      %v2905 = vadd.f32 0.0, %v2904
      %v2906 = vpop.f32.mrf.mxu0
      %v2907 = vadd.f32 0.0, %v2906
      %2908 = vmatmul.bf16.gmra.mxu0 %v2834
      %v2909 = vpop.f32.mrf.mxu0
      %v2910 = vadd.f32 0.0, %v2909
      %v2911 = vpop.f32.mrf.mxu0
      %v2912 = vadd.f32 0.0, %v2911
      %2913 = vmatmul.bf16.gmra.mxu0 %v2837
      %v2914 = vpop.f32.mrf.mxu0
      %v2915 = vadd.f32 0.0, %v2914
      %v2916 = vpop.f32.mrf.mxu0
      %v2917 = vadd.f32 0.0, %v2916
      %2918 = vmatmul.bf16.gmra.mxu0 %v2840
      %v2919 = vpop.f32.mrf.mxu0
      %v2920 = vadd.f32 0.0, %v2919
      %v2921 = vpop.f32.mrf.mxu0
      %v2922 = vadd.f32 0.0, %v2921
      %2923 = vmatmul.bf16.gmra.mxu0 %v2843
      %v2924 = vpop.f32.mrf.mxu0
      %v2925 = vadd.f32 0.0, %v2924
      %v2926 = vpop.f32.mrf.mxu0
      %v2927 = vadd.f32 0.0, %v2926
      %2928 = vmatmul.bf16.gmra.mxu0 %v2846
      %v2929 = vpop.f32.mrf.mxu0
      %v2930 = vadd.f32 0.0, %v2929
      %v2931 = vpop.f32.mrf.mxu0
      %v2932 = vadd.f32 0.0, %v2931
      %2933 = vmatmul.bf16.gmra.mxu0 %v2849
      %v2934 = vpop.f32.mrf.mxu0
      %v2935 = vadd.f32 0.0, %v2934
      %v2936 = vpop.f32.mrf.mxu0
      %v2937 = vadd.f32 0.0, %v2936
      %2938 = vmatmul.bf16.gmra.mxu0 %v2852
      %v2939 = vpop.f32.mrf.mxu0
      %v2940 = vadd.f32 0.0, %v2939
      %v2941 = vpop.f32.mrf.mxu0
      %v2942 = vadd.f32 0.0, %v2941
      %2943 = vmatmul.bf16.gmra.mxu0 %v2855
      %v2944 = vpop.f32.mrf.mxu0
      %v2945 = vadd.f32 0.0, %v2944
      %v2946 = vpop.f32.mrf.mxu0
      %v2947 = vadd.f32 0.0, %v2946
      %2948 = vmatmul.bf16.gmra.mxu0 %v2858
      %v2949 = vpop.f32.mrf.mxu0
      %v2950 = vadd.f32 0.0, %v2949
      %v2951 = vpop.f32.mrf.mxu0
      %v2952 = vadd.f32 0.0, %v2951
      %2953 = vmatmul.bf16.gmra.mxu0 %v2861
      %v2954 = vpop.f32.mrf.mxu0
      %v2955 = vadd.f32 0.0, %v2954
      %v2956 = vpop.f32.mrf.mxu0
      %v2957 = vadd.f32 0.0, %v2956
      %2958 = vmatmul.bf16.gmra.mxu0 %v2864
      %v2959 = vpop.f32.mrf.mxu0
      %v2960 = vadd.f32 0.0, %v2959
      %v2961 = vpop.f32.mrf.mxu0
      %v2962 = vadd.f32 0.0, %v2961
      %2963 = vmatmul.bf16.gmra.mxu0 %v2867
      %v2964 = vpop.f32.mrf.mxu0
      %v2965 = vadd.f32 0.0, %v2964
      %v2966 = vpop.f32.mrf.mxu0
      %v2967 = vadd.f32 0.0, %v2966
      %2968 = vmatmul.bf16.gmra.mxu0 %v2870
      %v2969 = vpop.f32.mrf.mxu0
      %v2970 = vadd.f32 0.0, %v2969
      %v2971 = vpop.f32.mrf.mxu0
      %v2972 = vadd.f32 0.0, %v2971
      %2973 = vdwg.mxu0
      %v2974 = vadd.f32 %v2738, %v2885
      %v2975 = vadd.f32 %v2739, %v2887
      %v2976 = vadd.f32 %v2740, %v2890
      %v2977 = vadd.f32 %v2741, %v2892
      %v2978 = vadd.f32 %v2742, %v2895
      %v2979 = vadd.f32 %v2743, %v2897
      %v2980 = vadd.f32 %v2744, %v2900
      %v2981 = vadd.f32 %v2745, %v2902
      %v2982 = vadd.f32 %v2746, %v2905
      %v2983 = vadd.f32 %v2747, %v2907
      %v2984 = vadd.f32 %v2748, %v2910
      %v2985 = vadd.f32 %v2749, %v2912
      %v2986 = vadd.f32 %v2750, %v2915
      %v2987 = vadd.f32 %v2751, %v2917
      %v2988 = vadd.f32 %v2752, %v2920
      %v2989 = vadd.f32 %v2753, %v2922
      %v2990 = vadd.f32 %v2754, %v2925
      %v2991 = vadd.f32 %v2755, %v2927
      %v2992 = vadd.f32 %v2756, %v2930
      %v2993 = vadd.f32 %v2757, %v2932
      %v2994 = vadd.f32 %v2758, %v2935
      %v2995 = vadd.f32 %v2759, %v2937
      %v2996 = vadd.f32 %v2760, %v2940
      %v2997 = vadd.f32 %v2761, %v2942
      %v2998 = vadd.f32 %v2762, %v2945
      %v2999 = vadd.f32 %v2763, %v2947
      %v3000 = vadd.f32 %v2764, %v2950
      %v3001 = vadd.f32 %v2765, %v2952
      %v3002 = vadd.f32 %v2766, %v2955
      %v3003 = vadd.f32 %v2767, %v2957
      %v3004 = vadd.f32 %v2768, %v2960
      %v3005 = vadd.f32 %v2769, %v2962
      %v3006 = vadd.f32 %v2770, %v2965
      %v3007 = vadd.f32 %v2771, %v2967
      %v3008 = vadd.f32 %v2772, %v2970
      %v3009 = vadd.f32 %v2773, %v2972
      %v3010 = vld [vmem:[%s251] sm:$0x1]
      %v3012 = vperm.slane %v3010, 0
      %v3014 = vmul.f32 %v2974, %v3012
      %v3015 = vmul.f32 %v2975, %v3012
      %v3016 = vmul.f32 %v2976, %v3012
      %v3017 = vmul.f32 %v2977, %v3012
      %v3018 = vmul.f32 %v2978, %v3012
      %v3019 = vmul.f32 %v2979, %v3012
      %v3020 = vmul.f32 %v2980, %v3012
      %v3021 = vmul.f32 %v2981, %v3012
      %v3022 = vmul.f32 %v2982, %v3012
      %v3023 = vmul.f32 %v2983, %v3012
      %v3024 = vmul.f32 %v2984, %v3012
      %v3025 = vmul.f32 %v2985, %v3012
      %v3026 = vmul.f32 %v2986, %v3012
      %v3027 = vmul.f32 %v2987, %v3012
      %v3028 = vmul.f32 %v2988, %v3012
      %v3029 = vmul.f32 %v2989, %v3012
      %v3030 = vmul.f32 %v2990, %v3012
      %v3031 = vmul.f32 %v2991, %v3012
      %v3032 = vmul.f32 %v2992, %v3012
      %v3033 = vmul.f32 %v2993, %v3012
      %v3034 = vmul.f32 %v2994, %v3012
      %v3035 = vmul.f32 %v2995, %v3012
      %v3036 = vmul.f32 %v2996, %v3012
      %v3037 = vmul.f32 %v2997, %v3012
      %v3038 = vmul.f32 %v2998, %v3012
      %v3039 = vmul.f32 %v2999, %v3012
      %v3040 = vmul.f32 %v3000, %v3012
      %v3041 = vmul.f32 %v3001, %v3012
      %v3042 = vmul.f32 %v3002, %v3012
      %v3043 = vmul.f32 %v3003, %v3012
      %v3044 = vmul.f32 %v3004, %v3012
      %v3045 = vmul.f32 %v3005, %v3012
      %v3046 = vmul.f32 %v3006, %v3012
      %v3047 = vmul.f32 %v3007, %v3012
      %v3048 = vmul.f32 %v3008, %v3012
      %v3049 = vmul.f32 %v3009, %v3012
      %v3050 = vld [vmem:[%s254] sm:$0x1]
      %v3052 = vperm.slane %v3050, 0
      %v3054 = vadd.f32 %v3014, %v3052
      %v3055 = vadd.f32 %v3015, %v3052
      %v3056 = vadd.f32 %v3016, %v3052
      %v3057 = vadd.f32 %v3017, %v3052
      %v3058 = vadd.f32 %v3018, %v3052
      %v3059 = vadd.f32 %v3019, %v3052
      %v3060 = vadd.f32 %v3020, %v3052
      %v3061 = vadd.f32 %v3021, %v3052
      %v3062 = vadd.f32 %v3022, %v3052
      %v3063 = vadd.f32 %v3023, %v3052
      %v3064 = vadd.f32 %v3024, %v3052
      %v3065 = vadd.f32 %v3025, %v3052
      %v3066 = vadd.f32 %v3026, %v3052
      %v3067 = vadd.f32 %v3027, %v3052
      %v3068 = vadd.f32 %v3028, %v3052
      %v3069 = vadd.f32 %v3029, %v3052
      %v3070 = vadd.f32 %v3030, %v3052
      %v3071 = vadd.f32 %v3031, %v3052
      %v3072 = vadd.f32 %v3032, %v3052
      %v3073 = vadd.f32 %v3033, %v3052
      %v3074 = vadd.f32 %v3034, %v3052
      %v3075 = vadd.f32 %v3035, %v3052
      %v3076 = vadd.f32 %v3036, %v3052
      %v3077 = vadd.f32 %v3037, %v3052
      %v3078 = vadd.f32 %v3038, %v3052
      %v3079 = vadd.f32 %v3039, %v3052
      %v3080 = vadd.f32 %v3040, %v3052
      %v3081 = vadd.f32 %v3041, %v3052
      %v3082 = vadd.f32 %v3042, %v3052
      %v3083 = vadd.f32 %v3043, %v3052
      %v3084 = vadd.f32 %v3044, %v3052
      %v3085 = vadd.f32 %v3045, %v3052
      %v3086 = vadd.f32 %v3046, %v3052
      %v3087 = vadd.f32 %v3047, %v3052
      %v3088 = vadd.f32 %v3048, %v3052
      %v3089 = vadd.f32 %v3049, %v3052
      %v3090 = vmax.f32 %v3054, 0.0
      %v3091 = vmax.f32 %v3055, 0.0
      %v3092 = vmax.f32 %v3056, 0.0
      %v3093 = vmax.f32 %v3057, 0.0
      %v3094 = vmax.f32 %v3058, 0.0
      %v3095 = vmax.f32 %v3059, 0.0
      %v3096 = vmax.f32 %v3060, 0.0
      %v3097 = vmax.f32 %v3061, 0.0
      %v3098 = vmax.f32 %v3062, 0.0
      %v3099 = vmax.f32 %v3063, 0.0
      %v3100 = vmax.f32 %v3064, 0.0
      %v3101 = vmax.f32 %v3065, 0.0
      %v3102 = vmax.f32 %v3066, 0.0
      %v3103 = vmax.f32 %v3067, 0.0
      %v3104 = vmax.f32 %v3068, 0.0
      %v3105 = vmax.f32 %v3069, 0.0
      %v3106 = vmax.f32 %v3070, 0.0
      %v3107 = vmax.f32 %v3071, 0.0
      %v3108 = vmax.f32 %v3072, 0.0
      %v3109 = vmax.f32 %v3073, 0.0
      %v3110 = vmax.f32 %v3074, 0.0
      %v3111 = vmax.f32 %v3075, 0.0
      %v3112 = vmax.f32 %v3076, 0.0
      %v3113 = vmax.f32 %v3077, 0.0
      %v3114 = vmax.f32 %v3078, 0.0
      %v3115 = vmax.f32 %v3079, 0.0
      %v3116 = vmax.f32 %v3080, 0.0
      %v3117 = vmax.f32 %v3081, 0.0
      %v3118 = vmax.f32 %v3082, 0.0
      %v3119 = vmax.f32 %v3083, 0.0
      %v3120 = vmax.f32 %v3084, 0.0
      %v3121 = vmax.f32 %v3085, 0.0
      %v3122 = vmax.f32 %v3086, 0.0
      %v3123 = vmax.f32 %v3087, 0.0
      %v3124 = vmax.f32 %v3088, 0.0
      %v3125 = vmax.f32 %v3089, 0.0
      %v3126 = vpack.c.bf16 %v3090, %v3090
      %v3127 = vpack.c.bf16 %v3091, %v3091
      %v3128 = vpack.c.bf16 %v3092, %v3092
      %v3129 = vpack.c.bf16 %v3093, %v3093
      %v3130 = vpack.c.bf16 %v3094, %v3094
      %v3131 = vpack.c.bf16 %v3095, %v3095
      %v3132 = vpack.c.bf16 %v3096, %v3096
      %v3133 = vpack.c.bf16 %v3097, %v3097
      %v3134 = vpack.c.bf16 %v3098, %v3098
      %v3135 = vpack.c.bf16 %v3099, %v3099
      %v3136 = vpack.c.bf16 %v3100, %v3100
      %v3137 = vpack.c.bf16 %v3101, %v3101
      %v3138 = vpack.c.bf16 %v3102, %v3102
      %v3139 = vpack.c.bf16 %v3103, %v3103
      %v3140 = vpack.c.bf16 %v3104, %v3104
      %v3141 = vpack.c.bf16 %v3105, %v3105
      %v3142 = vpack.c.bf16 %v3106, %v3106
      %v3143 = vpack.c.bf16 %v3107, %v3107
      %v3144 = vpack.c.bf16 %v3108, %v3108
      %v3145 = vpack.c.bf16 %v3109, %v3109
      %v3146 = vpack.c.bf16 %v3110, %v3110
      %v3147 = vpack.c.bf16 %v3111, %v3111
      %v3148 = vpack.c.bf16 %v3112, %v3112
      %v3149 = vpack.c.bf16 %v3113, %v3113
      %v3150 = vpack.c.bf16 %v3114, %v3114
      %v3151 = vpack.c.bf16 %v3115, %v3115
      %v3152 = vpack.c.bf16 %v3116, %v3116
      %v3153 = vpack.c.bf16 %v3117, %v3117
      %v3154 = vpack.c.bf16 %v3118, %v3118
      %v3155 = vpack.c.bf16 %v3119, %v3119
      %v3156 = vpack.c.bf16 %v3120, %v3120
      %v3157 = vpack.c.bf16 %v3121, %v3121
      %v3158 = vpack.c.bf16 %v3122, %v3122
      %v3159 = vpack.c.bf16 %v3123, %v3123
      %v3160 = vpack.c.bf16 %v3124, %v3124
      %v3161 = vpack.c.bf16 %v3125, %v3125
      %3162 = vst [vmem:[%s262] sm:$0xf] %v3126
      %3163 = vst [vmem:[%s262 + $0x4] sm:$0xf] %v3127
      %3164 = vst [vmem:[%s262 + $0x8] sm:$0xf] %v3128
      %3165 = vst [vmem:[%s262 + $0xc] sm:$0xf] %v3129
      %3166 = vst [vmem:[%s262 + $0x10] sm:$0xf] %v3130
      %3167 = vst [vmem:[%s262 + $0x14] sm:$0xf] %v3131
      %3168 = vst [vmem:[%s262 + $0x18] sm:$0xf] %v3132
      %3169 = vst [vmem:[%s262 + $0x1c] sm:$0xf] %v3133
      %3170 = vst [vmem:[%s262 + $0x20] sm:$0xf] %v3134
      %3171 = vst [vmem:[%s262 + $0x24] sm:$0xf] %v3135
      %3172 = vst [vmem:[%s262 + $0x28] sm:$0xf] %v3136
      %3173 = vst [vmem:[%s262 + $0x2c] sm:$0xf] %v3137
      %3174 = vst [vmem:[%s262 + $0x30] sm:$0xf] %v3138
      %3175 = vst [vmem:[%s262 + $0x34] sm:$0xf] %v3139
      %3176 = vst [vmem:[%s262 + $0x38] sm:$0xf] %v3140
      %3177 = vst [vmem:[%s262 + $0x3c] sm:$0xf] %v3141
      %3178 = vst [vmem:[%s262 + $0x40] sm:$0xf] %v3142
      %3179 = vst [vmem:[%s262 + $0x44] sm:$0xf] %v3143
      %3180 = vst [vmem:[%s262 + $0x48] sm:$0xf] %v3144
      %3181 = vst [vmem:[%s262 + $0x4c] sm:$0xf] %v3145
      %3182 = vst [vmem:[%s262 + $0x50] sm:$0xf] %v3146
      %3183 = vst [vmem:[%s262 + $0x54] sm:$0xf] %v3147
      %3184 = vst [vmem:[%s262 + $0x58] sm:$0xf] %v3148
      %3185 = vst [vmem:[%s262 + $0x5c] sm:$0xf] %v3149
      %3186 = vst [vmem:[%s262 + $0x60] sm:$0xf] %v3150
      %3187 = vst [vmem:[%s262 + $0x64] sm:$0xf] %v3151
      %3188 = vst [vmem:[%s262 + $0x68] sm:$0xf] %v3152
      %3189 = vst [vmem:[%s262 + $0x6c] sm:$0xf] %v3153
      %3190 = vst [vmem:[%s262 + $0x70] sm:$0xf] %v3154
      %3191 = vst [vmem:[%s262 + $0x74] sm:$0xf] %v3155
      %3192 = vst [vmem:[%s262 + $0x78] sm:$0xf] %v3156
      %3193 = vst [vmem:[%s262 + $0x7c] sm:$0xf] %v3157
      %3194 = vst [vmem:[%s262 + $0x80] sm:$0xf] %v3158
      %3195 = vst [vmem:[%s262 + $0x84] sm:$0xf] %v3159
      %3196 = vst [vmem:[%s262 + $0x88] sm:$0xf] %v3160
      %3197 = vst [vmem:[%s262 + $0x8c] sm:$0xf] %v3161
      %p3198 = scmp.lt.s32.totalorder %s20, 1
      %s3199 = scalar_select %p3198, %s20, 1
      %p3200 = scmp.lt.s32.totalorder %s19, 0
      %s3201 = scalar_select %p3200, %s19, 0
      %s3202 = smul.addr %s3199, 36
      %s3203 = sadd.s32 %s3201, %s3202
      %s3204 = smul.addr %s3203, 4
      %s3205 = scalar_lea.vmem %s4, %s3204
      // Predicated region
      $region37: #{basic_block_1w4a_forward.1} parent=35 // pred_check
        %p3206 = pneg %p151
      $region38: #{basic_block_1w4a_forward.1} parent=35 // pred_check_branch
        %3208 = sbr.rel (%p3206) target = $region40
      $region39: #{basic_block_1w4a_forward.1} parent=35 // pred_region
        _
      $region40: #{basic_block_1w4a_forward.1} parent=35 // pred_fallthru
        _
    $region36: #{basic_block_1w4a_forward.1} parent=5 // pred_fallthru
      _
    %p3209 = scmp.le.s32.totalorder 2, %s10
    // Predicated region
    $region41: #{basic_block_1w4a_forward.1} parent=5 // pred_check
      %p3210 = pneg %p3209
    $region42: #{basic_block_1w4a_forward.1} parent=5 // pred_check_branch
      %3212 = sbr.rel (%p3210) target = $region44
    $region43: #{basic_block_1w4a_forward.1} parent=5 // pred_region
      %s3213 = ssub.s32 %s10, 2
      // Predicated region
      $region45: #{basic_block_1w4a_forward.1} parent=43 // pred_check
        %p3214 = pneg %p157
      $region46: #{basic_block_1w4a_forward.1} parent=43 // pred_check_branch
        %3216 = sbr.rel (%p3214) target = $region48
      $region47: #{basic_block_1w4a_forward.1} parent=43 // pred_region
        %p3217 = scmp.lt.s32.totalorder %s22, 1
        %s3218 = scalar_select %p3217, %s22, 1
        %p3219 = scmp.lt.s32.totalorder %s21, 0
        %s3220 = scalar_select %p3219, %s21, 0
        %s3221 = smul.addr %s3218, 36
        %s3222 = sadd.s32 %s3220, %s3221
        %s3223 = smul.addr %s3222, 4
        %s3224 = scalar_lea.vmem %s4, %s3223
      $region48: #{basic_block_1w4a_forward.1} parent=43 // pred_fallthru
        _
    $region44: #{basic_block_1w4a_forward.1} parent=5 // pred_fallthru
      _
  $region6: #{basic_block_1w4a_forward.1} parent=0 // loop_footer
    %s14 = sadd.s32 1, %s10
  $region7: #{basic_block_1w4a_forward.1} parent=0 // loop_footer_branch
    %9 = sbr.rel target = $region3
  $region8: #{basic_block_1w4a_forward.1} parent=0 // loop_exit
    _

</llo_original>
